<compile_context>
chip_gen: v5e
topology: v5e:2x2
jax: 0.10.0
libtpu: 0.0.40
codegen_flags: <defaults>
</compile_context>

<pallas_src>
import jax
import jax.numpy as jnp
from jax import lax
from jax.experimental import pallas as pl
from jax.experimental.pallas import tpu as pltpu


# v7x has only 64 MiB physical VMEM per TensorCore, so keep the scoped limit at
# 48 MiB (also comfortably above the 16/32 MiB scoped defaults on v5e/v6e) and
# size double-buffered blocks against a 40 MiB budget.
_VMEM_LIMIT_BYTES = 48 * 1024 * 1024
_BLOCK_BUDGET_BYTES = 40 * 1024 * 1024


def _divisor_tiles(dim, align, max_tile):
    """Divisors of `dim` that are multiples of `align` and <= max_tile, descending."""
    hi = min(dim, max_tile)
    return sorted((t for t in range(align, hi + 1, align) if dim % t == 0),
                  reverse=True)


def _select_tiles(hw, c, dtype_bytes, batch):
    """Pick (tq, tp, ck) under the VMEM block budget.

    Preference order:
      1. keep the contraction axis whole and spatial tiles >= 256 (MXU friendly,
         lane-dense output), shrinking tq before tp;
      2. only then tile the channel axis (ck multiple of 128) + accumulator;
      3. last resort: shrink the spatial tiles further.
    """
    p_all = _divisor_tiles(hw, 128, 1024) or [hw]   # lane-dense or full extent
    q_all = _divisor_tiles(hw, 8, 2048) or [hw]     # sublane-aligned or full extent

    def fits(tq, tp, ck):
        # double-buffered A, B and output blocks
        return 2 * (tq * ck + ck * tp + tq * tp) * dtype_bytes <= _BLOCK_BUDGET_BYTES

    p_big = [t for t in p_all if t >= 256] or p_all[:1]
    q_big = [t for t in q_all if t >= 256] or q_all[:1]

    choice = None
    # Pass 1: whole channel axis.
    for tp in p_big:
        for tq in q_big:
            if fits(tq, tp, c):
                choice = (tq, tp, c)
                break
        if choice:
            break

    # Pass 2: tile the channel axis instead of shrinking tq/tp below ~256.
    if choice is None:
        k_cands = _divisor_tiles(c, 128, max(c // 2, 128))
        for ck in k_cands:
            for tp in p_big:
                for tq in q_big:
                    if fits(tq, tp, ck):
                        choice = (tq, tp, ck)
                        break
                if choice:
                    break
            if choice:
                break
        # Pass 3: shrink the spatial tiles as a last resort.
        if choice is None:
            ck = k_cands[-1] if k_cands else c
            for tp in p_all:
                for tq in q_all:
                    if fits(tq, tp, ck):
                        choice = (tq, tp, ck)
                        break
                if choice:
                    break
            if choice is None:
                choice = (q_all[-1], p_all[-1], ck)

    tq, tp, ck = choice
    # v7x megacore: ensure a single-image call still exposes >= 2 parallel tiles
    # so both TensorCores get work.
    if batch == 1 and (hw // tq) * (hw // tp) < 2:
        smaller = [t for t in q_all if t < tq]
        if smaller:
            tq = smaller[0]
    return tq, tp, ck


def _corr_kernel(a_ref, b_ref, o_ref):
    # a_ref: (1, TQ, C)   b_ref: (1, C, TP)   o_ref: (1, TQ, TP)
    o_ref[0] = jnp.dot(
        a_ref[0], b_ref[0],
        preferred_element_type=jnp.float32,
        precision=lax.Precision.HIGHEST,
    ).astype(o_ref.dtype)


def _corr_kernel_ktiled(a_ref, b_ref, o_ref, acc_ref):
    # a_ref: (1, TQ, CK)  b_ref: (1, CK, TP)  o_ref: (1, TQ, TP)  acc_ref: (TQ, TP) f32
    k = pl.program_id(3)

    @pl.when(k == 0)
    def _():
        acc_ref[...] = jnp.zeros_like(acc_ref)

    acc_ref[...] += jnp.dot(
        a_ref[0], b_ref[0],
        preferred_element_type=jnp.float32,
        precision=lax.Precision.HIGHEST,
    )

    @pl.when(k == pl.num_programs(3) - 1)
    def _():
        o_ref[0] = acc_ref[...].astype(o_ref.dtype)


def feature_correlation(feature_A, feature_B):
    """feature_A, feature_B: (b, c, h, w). Returns (b, h*w, h, w)."""
    b, c, h, w = feature_A.shape
    hw = h * w
    dtype = feature_A.dtype
    dtype_bytes = jnp.dtype(dtype).itemsize

    # LHS: A with spatial dims swapped -> (b, hw, c), q = wA*h + hA (one small HBM pass).
    a_t = jnp.transpose(feature_A, (0, 3, 2, 1)).reshape(b, hw, c)
    # RHS: B flattened row-major -> (b, c, hw), p = i*w + j (free reshape, no copy).
    b_f = feature_B.reshape(b, c, hw)

    tq, tp, ck = _select_tiles(hw, c, dtype_bytes, b)

    cost = pl.CostEstimate(
        flops=2 * b * hw * hw * c,
        transcendentals=0,
        bytes_accessed=(a_t.size + b_f.size + b * hw * hw) * dtype_bytes,
    )

    if ck == c:
        out = pl.pallas_call(
            _corr_kernel,
            out_shape=jax.ShapeDtypeStruct((b, hw, hw), dtype),
            grid=(b, hw // tq, hw // tp),
            in_specs=[
                pl.BlockSpec((1, tq, c), lambda n, i, j: (n, i, 0)),
                pl.BlockSpec((1, c, tp), lambda n, i, j: (n, 0, j)),
            ],
            out_specs=pl.BlockSpec((1, tq, tp), lambda n, i, j: (n, i, j)),
            compiler_params=pltpu.CompilerParams(
                dimension_semantics=("parallel", "parallel", "parallel"),
                vmem_limit_bytes=_VMEM_LIMIT_BYTES,
            ),
            cost_estimate=cost,
        )(a_t, b_f)
    else:
        out = pl.pallas_call(
            _corr_kernel_ktiled,
            out_shape=jax.ShapeDtypeStruct((b, hw, hw), dtype),
            grid=(b, hw // tq, hw // tp, c // ck),
            in_specs=[
                pl.BlockSpec((1, tq, ck), lambda n, i, j, k: (n, i, k)),
                pl.BlockSpec((1, ck, tp), lambda n, i, j, k: (n, k, j)),
            ],
            out_specs=pl.BlockSpec((1, tq, tp), lambda n, i, j, k: (n, i, j)),
            scratch_shapes=[pltpu.VMEM((tq, tp), jnp.float32)],
            compiler_params=pltpu.CompilerParams(
                dimension_semantics=("parallel", "parallel", "parallel", "arbitrary"),
                vmem_limit_bytes=_VMEM_LIMIT_BYTES,
            ),
            cost_estimate=cost,
        )(a_t, b_f)

    # (b, hw, hw) -> (b, hw, h, w): row-major reshape, no data movement, no crop.
    return out.reshape(b, hw, h, w)


def _reference(feature_A, feature_B):
    """Plain-JAX transcription of the PyTorch forward."""
    b, c, h, w = feature_A.shape
    A = jnp.transpose(feature_A, (0, 1, 3, 2)).reshape(b, c, h * w)   # (b, c, w*h)
    B = jnp.transpose(feature_B.reshape(b, c, h * w), (0, 2, 1))      # (b, h*w, c)
    mul = jnp.einsum("bpc,bcq->bpq", B, A,
                     precision=lax.Precision.HIGHEST)                 # (b, h*w, w*h)
    corr = mul.reshape(b, h, w, h * w)
    return jnp.transpose(corr, (0, 3, 1, 2))                          # (b, h*w, h, w)


if __name__ == "__main__":
    key = jax.random.PRNGKey(0)
    k_a, k_b = jax.random.split(key)
    feature_A = jax.random.normal(k_a, (2, 4, 16, 16), dtype=jnp.float32)
    feature_B = jax.random.normal(k_b, (2, 4, 16, 16), dtype=jnp.float32)

    y = jax.jit(feature_correlation)(feature_A, feature_B)
    jax.block_until_ready(y)

    ref = _reference(feature_A, feature_B)
    assert y.shape == (2, 16 * 16, 16, 16), y.shape
    assert y.dtype == feature_A.dtype
    assert jnp.allclose(y, ref, atol=1e-4, rtol=1e-4), float(jnp.max(jnp.abs(y - ref)))

    print("KERNEL_OK")
</pallas_src>

<mosaic_0001>
module attributes {stable_mosaic.version = 11 : i64} {
  func.func @_corr_kernel(%arg0: i32, %arg1: i32, %arg2: i32, %arg3: memref<1x256x4xf32, #tpu.memory_space<vmem>>, %arg4: memref<1x4x256xf32, #tpu.memory_space<vmem>>, %arg5: memref<1x256x256xf32, #tpu.memory_space<vmem>>) attributes {dimension_semantics = [#tpu.dimension_semantics<parallel>, #tpu.dimension_semantics<parallel>, #tpu.dimension_semantics<parallel>], iteration_bounds = array<i64: 2, 1, 1>, scalar_prefetch = 0 : i64, scratch_operands = 0 : i64, tpu.core_type = #tpu.core_type<tc>, window_params = [{transform_indices = @transform_0, window_bounds = array<i64: 1, 256, 4>}, {transform_indices = @transform_1, window_bounds = array<i64: 1, 4, 256>}, {transform_indices = @transform_2, window_bounds = array<i64: 1, 256, 256>}]} {
    %c0 = arith.constant 0 : index
    %c0_0 = arith.constant 0 : index
    %c0_1 = arith.constant 0 : index
    %0 = vector.load %arg3[%c0, %c0_0, %c0_1] : memref<1x256x4xf32, #tpu.memory_space<vmem>>, vector<1x256x4xf32>
    %1 = vector.shape_cast %0 : vector<1x256x4xf32> to vector<256x4xf32>
    %c0_2 = arith.constant 0 : index
    %c0_3 = arith.constant 0 : index
    %c0_4 = arith.constant 0 : index
    %2 = vector.load %arg4[%c0_2, %c0_3, %c0_4] : memref<1x4x256xf32, #tpu.memory_space<vmem>>, vector<1x4x256xf32>
    %3 = vector.shape_cast %2 : vector<1x4x256xf32> to vector<4x256xf32>
    %cst = arith.constant dense<0.000000e+00> : vector<256x256xf32>
    %4 = tpu.matmul %1, %3, %cst {dimension_numbers = #tpu.dot_dimension_numbers<[1], [0], [0], [1], [0, 0, 1, 1], [], []>, precision = #tpu.contract_precision<fp32>} : vector<256x4xf32>, vector<4x256xf32>, vector<256x256xf32> -> vector<256x256xf32>
    %c0_5 = arith.constant 0 : index
    %c0_6 = arith.constant 0 : index
    %c0_7 = arith.constant 0 : index
    %5 = vector.load %arg5[%c0_5, %c0_6, %c0_7] : memref<1x256x256xf32, #tpu.memory_space<vmem>>, vector<1x256x256xf32>
    %6 = vector.shape_cast %5 : vector<1x256x256xf32> to vector<256x256xf32>
    %7 = vector.shape_cast %4 : vector<256x256xf32> to vector<1x256x256xf32>
    tpu.vector_store %arg5[%c0_5, %c0_6, %c0_7], %7 {strides = array<i32>} : memref<1x256x256xf32, #tpu.memory_space<vmem>>, vector<1x256x256xf32>,
    return
  }
  func.func @transform_0(%arg0: i32, %arg1: i32, %arg2: i32) -> (i32, i32, i32) {
    %c0_i32 = arith.constant 0 : i32
    %c0_i32_0 = arith.constant 0 : i32
    return %arg0, %arg1, %c0_i32 : i32, i32, i32
  }
  func.func @transform_1(%arg0: i32, %arg1: i32, %arg2: i32) -> (i32, i32, i32) {
    %c0_i32 = arith.constant 0 : i32
    %c0_i32_0 = arith.constant 0 : i32
    return %arg0, %c0_i32, %arg2 : i32, i32, i32
  }
  func.func @transform_2(%arg0: i32, %arg1: i32, %arg2: i32) -> (i32, i32, i32) {
    %c0_i32 = arith.constant 0 : i32
    return %arg0, %arg1, %arg2 : i32, i32, i32
  }
}

</mosaic_0001>

<llo_original>
// kernel: feature_correlation.1
$region0: #{feature_correlation.1}
  #allocation0 [shape = 'u32[]', space=smem, size = 0x4, offset = 0x4, fixed_abs, tag = 'smem constant byte address 0x4 - core index']
  #allocation1 [shape = 'u32[72,128]{1,0:T(1,128)}', space=vmem, size = 0x9000, scoped, tag = 'internal scratch']
  %s0 = inlined_call_operand.vmem [shape: f32[2,256,4], index: 0, kind: input, shape index: {}]
  %s1 = inlined_call_operand.vmem [shape: f32[2,4,256], index: 1, kind: input, shape index: {}]
  %s2 = inlined_call_operand.vmem [shape: f32[2,256,256], index: 2, kind: output, shape index: {}]
  %s3 = sld [smem:[#allocation0]]
  $region41: #{feature_correlation.1} parent=0
    _
  %s5 = ssub.s32 1, %s3
  %s6 = scalar_select 0, %s5, %s3
  loop: start=0, step=1, limit=4
  $region2: #{feature_correlation.1} parent=0 // loop_pre_header
    _
  $region3: #{feature_correlation.1} parent=0 // loop_header
    %s8 = sphi 0, %s12
    %p9 = scmp.ge.s32.totalorder %s8, 4
    %s15 = sphi 0, %s34
    %s16 = sphi 0, %s30
    %s17 = sphi 0, %s26
    %s18 = sphi 0, %s15
    %s19 = sphi 0, %s16
    %s20 = sphi 0, %s17
    %s21 = sphi 0, %s18
    %s22 = sphi 0, %s19
    %s23 = sphi 0, %s20
    %s39 = sphi 0, %s41
    %s42 = sphi 0, %s39
    %s43 = sphi 0, %s42
    %s59 = sphi 0, %s43
    %s67 = sphi 0, %s69
    %s70 = sphi 0, %s67
    %s71 = sphi 0, %s70
    %s87 = sphi 0, %s71
    %s97 = sphi 0, %s99
    %s100 = sphi 0, %s97
    %s101 = sphi 0, %s100
    %s117 = sphi 0, %s101
  $region4: #{feature_correlation.1} parent=0 // loop_header_branch
    %11 = sbr.rel (%p9) target = $region8
  $region5: #{feature_correlation.1} parent=0 // loop_body
    %s13 = ssub.s32 %s8, 1
    %s14 = ssub.s32 %s8, 2
    %s24 = sadd.s32 1, %s17
    %p25 = scmp.ge.s32.totalorder %s24, 1
    %s26 = scalar_select %p25, 0, %s24
    %s27 = sadd.s32 1, %s16
    %s28 = scalar_select %p25, %s27, %s16
    %p29 = scmp.ge.s32.totalorder %s28, 1
    %s30 = scalar_select %p29, 0, %s28
    %s31 = sadd.s32 1, %s15
    %s32 = scalar_select %p29, %s31, %s15
    %p33 = scmp.ge.s32.totalorder %s32, 2
    %s34 = scalar_select %p33, 0, %s32
    %s35 = ssub.s32 %s15, %s34
    %s36 = ssub.s32 %s16, %s30
    %s37 = sor.u32 %s35, %s36
    %p38 = scmp.eq.s32.totalorder %s37, 0
    %s40 = sadd.s32 %s39, 1
    %s41 = scalar_select %p38, %s39, %s40
    %p44 = pneg %p38
    %p45 = scmp.eq.s32.totalorder %s8, 1
    %p46 = por %p44, %p45
    %p47 = scmp.ne.s32.totalorder %s39, %s42
    %p48 = scmp.eq.s32.totalorder %s8, 0
    %p49 = por %p47, %p48
    %p50 = scmp.ne.s32.totalorder %s39, %s42
    %p51 = scmp.eq.s32.totalorder %s13, 1
    %p52 = por %p50, %p51
    %p53 = scmp.ne.s32.totalorder %s42, %s43
    %p54 = scmp.eq.s32.totalorder %s13, 0
    %p55 = por %p53, %p54
    %p56 = scmp.ne.s32.totalorder %s42, %s43
    %p57 = scmp.eq.s32.totalorder %s14, 1
    %p58 = por %p56, %p57
    %p60 = scmp.ne.s32.totalorder %s43, %s59
    %p61 = scmp.eq.s32.totalorder %s14, 0
    %p62 = por %p60, %p61
    %s63 = ssub.s32 %s15, %s34
    %s64 = ssub.s32 %s17, %s26
    %s65 = sor.u32 %s63, %s64
    %p66 = scmp.eq.s32.totalorder %s65, 0
    %s68 = sadd.s32 %s67, 1
    %s69 = scalar_select %p66, %s67, %s68
    %p72 = pneg %p66
    %p73 = scmp.eq.s32.totalorder %s8, 1
    %p74 = por %p72, %p73
    %p75 = scmp.ne.s32.totalorder %s67, %s70
    %p76 = scmp.eq.s32.totalorder %s8, 0
    %p77 = por %p75, %p76
    %p78 = scmp.ne.s32.totalorder %s67, %s70
    %p79 = scmp.eq.s32.totalorder %s13, 1
    %p80 = por %p78, %p79
    %p81 = scmp.ne.s32.totalorder %s70, %s71
    %p82 = scmp.eq.s32.totalorder %s13, 0
    %p83 = por %p81, %p82
    %p84 = scmp.ne.s32.totalorder %s70, %s71
    %p85 = scmp.eq.s32.totalorder %s14, 1
    %p86 = por %p84, %p85
    %p88 = scmp.ne.s32.totalorder %s71, %s87
    %p89 = scmp.eq.s32.totalorder %s14, 0
    %p90 = por %p88, %p89
    %s91 = ssub.s32 %s15, %s34
    %s92 = ssub.s32 %s16, %s30
    %s93 = sor.u32 %s91, %s92
    %s94 = ssub.s32 %s17, %s26
    %s95 = sor.u32 %s93, %s94
    %p96 = scmp.eq.s32.totalorder %s95, 0
    %s98 = sadd.s32 %s97, 1
    %s99 = scalar_select %p96, %s97, %s98
    %p102 = pneg %p96
    %p103 = scmp.eq.s32.totalorder %s8, 1
    %p104 = por %p102, %p103
    %p105 = scmp.ne.s32.totalorder %s97, %s100
    %p106 = scmp.eq.s32.totalorder %s8, 0
    %p107 = por %p105, %p106
    %p108 = scmp.ne.s32.totalorder %s97, %s100
    %p109 = scmp.eq.s32.totalorder %s13, 1
    %p110 = por %p108, %p109
    %p111 = scmp.ne.s32.totalorder %s100, %s101
    %p112 = scmp.eq.s32.totalorder %s13, 0
    %p113 = por %p111, %p112
    %p114 = scmp.ne.s32.totalorder %s100, %s101
    %p115 = scmp.eq.s32.totalorder %s14, 1
    %p116 = por %p114, %p115
    %p118 = scmp.ne.s32.totalorder %s101, %s117
    %p119 = scmp.eq.s32.totalorder %s14, 0
    %p120 = por %p118, %p119
    %p121 = scmp.le.s32.totalorder 1, %s8
    %p122 = scmp.lt.s32.totalorder %s8, 3
    %p123 = pnand %p121, %p122
    %p124 = pneg %p123
    // Predicated region
    $region9: #{feature_correlation.1} parent=5 // pred_check
      _
    $region10: #{feature_correlation.1} parent=5 // pred_check_branch
      %126 = sbr.rel (%p123) target = $region12
    $region11: #{feature_correlation.1} parent=5 // pred_region
      %s127 = ssub.s32 %s8, 1
    $region12: #{feature_correlation.1} parent=5 // pred_fallthru
      _
    %p128 = scmp.lt.s32.totalorder %s8, 2
    // Predicated region
    $region13: #{feature_correlation.1} parent=5 // pred_check
      %p129 = pneg %p128
    $region14: #{feature_correlation.1} parent=5 // pred_check_branch
      %131 = sbr.rel (%p129) target = $region16
    $region15: #{feature_correlation.1} parent=5 // pred_region
      // Predicated region
      $region17: #{feature_correlation.1} parent=15 // pred_check
        %p132 = pneg %p49
      $region18: #{feature_correlation.1} parent=15 // pred_check_branch
        %134 = sbr.rel (%p132) target = $region20
      $region19: #{feature_correlation.1} parent=15 // pred_region
        %s135 = smul.u32 32, %s16
        %p136 = scmp.lt.s32.totalorder %s15, 1
        %s137 = scalar_select %p136, %s15, 1
        %p138 = scmp.lt.s32.totalorder %s135, 31
        %s139 = scalar_select %p138, %s135, 31
        %s140 = smul.addr %s137, 32
        %s141 = sadd.s32 %s139, %s140
        %s142 = smul.addr %s141, 8
        %s143 = scalar_lea.vmem %s0, %s142
        %s144 = smul.u32 32, %s16
      $region20: #{feature_correlation.1} parent=15 // pred_fallthru
        _
      // Predicated region
      $region21: #{feature_correlation.1} parent=15 // pred_check
        %p145 = pneg %p77
      $region22: #{feature_correlation.1} parent=15 // pred_check_branch
        %147 = sbr.rel (%p145) target = $region24
      $region23: #{feature_correlation.1} parent=15 // pred_region
        %s148 = smul.u32 2, %s17
        %p149 = scmp.lt.s32.totalorder %s15, 1
        %s150 = scalar_select %p149, %s15, 1
        %p151 = scmp.lt.s32.totalorder %s148, 1
        %s152 = scalar_select %p151, %s148, 1
        %s153 = smul.addr %s150, 2
        %s154 = sadd.s32 %s152, %s153
        %s155 = smul.addr %s154, 4
        %s156 = scalar_lea.vmem %s1, %s155
        %s157 = smul.u32 2, %s17
      $region24: #{feature_correlation.1} parent=15 // pred_fallthru
        _
    $region16: #{feature_correlation.1} parent=5 // pred_fallthru
      _
    %p158 = scmp.le.s32.totalorder 1, %s8
    %p159 = scmp.lt.s32.totalorder %s8, 3
    %p160 = pnand %p158, %p159
    %p161 = pneg %p160
    // Predicated region
    $region25: #{feature_correlation.1} parent=5 // pred_check
      _
    $region26: #{feature_correlation.1} parent=5 // pred_check_branch
      %163 = sbr.rel (%p160) target = $region28
    $region27: #{feature_correlation.1} parent=5 // pred_region
      %s164 = ssub.s32 %s8, 1
      %s165 = smul.u32 32, %s19
      %p166 = scmp.lt.s32.totalorder %s18, 1
      %s167 = scalar_select %p166, %s18, 1
      %p168 = scmp.lt.s32.totalorder %s165, 31
      %s169 = scalar_select %p168, %s165, 31
      %s170 = smul.addr %s167, 32
      %s171 = sadd.s32 %s169, %s170
      %s172 = smul.addr %s171, 8
      %s173 = scalar_lea.vmem %s0, %s172
      %p174 = pneg %p55
      %p175 = pneg %p52
      %s176 = smul.u32 2, %s20
      %p177 = scmp.lt.s32.totalorder %s18, 1
      %s178 = scalar_select %p177, %s18, 1
      %p179 = scmp.lt.s32.totalorder %s176, 1
      %s180 = scalar_select %p179, %s176, 1
      %s181 = smul.addr %s178, 2
      %s182 = sadd.s32 %s180, %s181
      %s183 = smul.addr %s182, 4
      %s184 = scalar_lea.vmem %s1, %s183
      %p185 = pneg %p83
      %p186 = pneg %p80
      %p187 = pneg %p113
      %p188 = pneg %p110
      %s189 = smul.u32 32, %s19
      %s190 = smul.u32 2, %s20
      %p191 = scmp.lt.s32.totalorder %s18, 1
      %s192 = scalar_select %p191, %s18, 1
      %p193 = scmp.lt.s32.totalorder %s189, 31
      %s194 = scalar_select %p193, %s189, 31
      %p195 = scmp.lt.s32.totalorder %s190, 1
      %s196 = scalar_select %p195, %s190, 1
      %s197 = smul.addr %s194, 2
      %s198 = sadd.s32 %s196, %s197
      %s199 = smul.addr %s192, 64
      %s200 = sadd.s32 %s198, %s199
      %s201 = smul.addr %s200, 8
      %s202 = scalar_lea.vmem %s2, %s201
      %s203 = smul.u32 32, %s19
      %p204 = scmp.lt.s32.totalorder %s18, 1
      %s205 = scalar_select %p204, %s18, 1
      %p206 = scmp.lt.s32.totalorder %s203, 31
      %s207 = scalar_select %p206, %s203, 31
      %s208 = smul.addr %s205, 32
      %s209 = sadd.s32 %s207, %s208
      %s210 = smul.addr %s209, 8
      %s211 = scalar_lea.vmem %s0, %s210
      %s212 = smul.u32 32, %s19
      %s213 = smul.u32 2, %s20
      %p214 = scmp.lt.s32.totalorder %s18, 1
      %s215 = scalar_select %p214, %s18, 1
      %p216 = scmp.lt.s32.totalorder %s213, 1
      %s217 = scalar_select %p216, %s213, 1
      %s218 = smul.addr %s215, 2
      %s219 = sadd.s32 %s217, %s218
      %s220 = smul.addr %s219, 4
      %s221 = scalar_lea.vmem %s1, %s220
      %s222 = smul.u32 2, %s20
      %s223 = smul.u32 32, %s19
      %s224 = smul.u32 2, %s20
      %p225 = scmp.lt.s32.totalorder %s18, 1
      %s226 = scalar_select %p225, %s18, 1
      %p227 = scmp.lt.s32.totalorder %s223, 31
      %s228 = scalar_select %p227, %s223, 31
      %p229 = scmp.lt.s32.totalorder %s224, 1
      %s230 = scalar_select %p229, %s224, 1
      %s231 = smul.addr %s228, 2
      %s232 = sadd.s32 %s230, %s231
      %s233 = smul.addr %s226, 64
      %s234 = sadd.s32 %s232, %s233
      %s235 = smul.addr %s234, 8
      %s236 = scalar_lea.vmem %s2, %s235
      %s237 = smul.u32 32, %s19
      %s238 = smul.u32 2, %s20
      %v239 = vld [vmem:[%s211] sm:$0xff]
      %v240 = vld [vmem:[%s211 + $0x8] sm:$0xff]
      %v241 = vld [vmem:[%s211 + $0x10] sm:$0xff]
      %v242 = vld [vmem:[%s211 + $0x18] sm:$0xff]
      %v243 = vld [vmem:[%s211 + $0x20] sm:$0xff]
      %v244 = vld [vmem:[%s211 + $0x28] sm:$0xff]
      %v245 = vld [vmem:[%s211 + $0x30] sm:$0xff]
      %v246 = vld [vmem:[%s211 + $0x38] sm:$0xff]
      %v247 = vld [vmem:[%s211 + $0x40] sm:$0xff]
      %v248 = vld [vmem:[%s211 + $0x48] sm:$0xff]
      %v249 = vld [vmem:[%s211 + $0x50] sm:$0xff]
      %v250 = vld [vmem:[%s211 + $0x58] sm:$0xff]
      %v251 = vld [vmem:[%s211 + $0x60] sm:$0xff]
      %v252 = vld [vmem:[%s211 + $0x68] sm:$0xff]
      %v253 = vld [vmem:[%s211 + $0x70] sm:$0xff]
      %v254 = vld [vmem:[%s211 + $0x78] sm:$0xff]
      %v255 = vld [vmem:[%s211 + $0x80] sm:$0xff]
      %v256 = vld [vmem:[%s211 + $0x88] sm:$0xff]
      %v257 = vld [vmem:[%s211 + $0x90] sm:$0xff]
      %v258 = vld [vmem:[%s211 + $0x98] sm:$0xff]
      %v259 = vld [vmem:[%s211 + $0xa0] sm:$0xff]
      %v260 = vld [vmem:[%s211 + $0xa8] sm:$0xff]
      %v261 = vld [vmem:[%s211 + $0xb0] sm:$0xff]
      %v262 = vld [vmem:[%s211 + $0xb8] sm:$0xff]
      %v263 = vld [vmem:[%s211 + $0xc0] sm:$0xff]
      %v264 = vld [vmem:[%s211 + $0xc8] sm:$0xff]
      %v265 = vld [vmem:[%s211 + $0xd0] sm:$0xff]
      %v266 = vld [vmem:[%s211 + $0xd8] sm:$0xff]
      %v267 = vld [vmem:[%s211 + $0xe0] sm:$0xff]
      %v268 = vld [vmem:[%s211 + $0xe8] sm:$0xff]
      %v269 = vld [vmem:[%s211 + $0xf0] sm:$0xff]
      %v270 = vld [vmem:[%s211 + $0xf8] sm:$0xff]
      %v271 = vld [vmem:[%s221] sm:$0xff]
      %273 = vst [vmem:[#allocation1] ss:$2 sm:$0xff] %v271
      %v274 = vld.sshfl [vmem:[#allocation1] sm:$0xff pattern:$0x75316420]
      %v275 = vld.sshfl [vmem:[#allocation1 + $0x8] sm:$0xff pattern:$0x75316420]
      %vm276 = vcmask 31744
      %v278 = vsel %vm276, %v239, 0
      %v281 = vsel %vm276, %v240, 0
      %v284 = vsel %vm276, %v241, 0
      %v287 = vsel %vm276, %v242, 0
      %v290 = vsel %vm276, %v243, 0
      %v293 = vsel %vm276, %v244, 0
      %v296 = vsel %vm276, %v245, 0
      %v299 = vsel %vm276, %v246, 0
      %v302 = vsel %vm276, %v247, 0
      %v305 = vsel %vm276, %v248, 0
      %v308 = vsel %vm276, %v249, 0
      %v311 = vsel %vm276, %v250, 0
      %v314 = vsel %vm276, %v251, 0
      %v317 = vsel %vm276, %v252, 0
      %v320 = vsel %vm276, %v253, 0
      %v323 = vsel %vm276, %v254, 0
      %v326 = vsel %vm276, %v255, 0
      %v329 = vsel %vm276, %v256, 0
      %v332 = vsel %vm276, %v257, 0
      %v335 = vsel %vm276, %v258, 0
      %v338 = vsel %vm276, %v259, 0
      %v341 = vsel %vm276, %v260, 0
      %v344 = vsel %vm276, %v261, 0
      %v347 = vsel %vm276, %v262, 0
      %v350 = vsel %vm276, %v263, 0
      %v353 = vsel %vm276, %v264, 0
      %v356 = vsel %vm276, %v265, 0
      %v359 = vsel %vm276, %v266, 0
      %v362 = vsel %vm276, %v267, 0
      %v365 = vsel %vm276, %v268, 0
      %v368 = vsel %vm276, %v269, 0
      %v371 = vsel %vm276, %v270, 0
      %vm373 = vcmask 1043456
      %v374 = vsel %vm373, %v274, 0
      %v376 = vsel %vm373, %v275, 0
      %378 = vmatpush.msra.mxu0 0.0
      %379 = vmatpush.msra.mxu0 0.0
      %380 = vmatpush.msra.mxu0 0.0
      %381 = vmatpush.msra.mxu0 0.0
      %382 = vmatpush.msra.mxu0 0.0
      %383 = vmatpush.msra.mxu0 0.0
      %384 = vmatpush.msra.mxu0 0.0
      %385 = vmatpush.msra.mxu0 0.0
      %386 = vmatpush.msra.mxu0 0.0
      %387 = vmatpush.msra.mxu0 0.0
      %388 = vmatpush.msra.mxu0 0.0
      %389 = vmatpush.msra.mxu0 0.0
      %390 = vmatpush.msra.mxu0 0.0
      %391 = vmatpush.msra.mxu0 0.0
      %392 = vmatpush.msra.mxu0 0.0
      %v393 = vand.u32 %v374, 4294901760
      %394 = vmatpush.msra.mxu0 %v393
      %v395 = vand.u32 %v278, 4294901760
      %v396 = vsub.f32 %v278, %v395
      %v397 = vand.u32 %v396, 4294901760
      %v398 = vsub.f32 %v396, %v397
      %v399 = vand.u32 %v398, 4294901760
      %400 = vmatmul.f32.gmra.mxu0 %v399
      %v401 = vpop.f32.mrf.mxu0
      %v402 = vadd.f32 0.0, %v401
      %v403 = vand.u32 %v281, 4294901760
      %v404 = vsub.f32 %v281, %v403
      %v405 = vand.u32 %v404, 4294901760
      %v406 = vsub.f32 %v404, %v405
      %v407 = vand.u32 %v406, 4294901760
      %408 = vmatmul.f32.gmra.mxu0 %v407
      %v409 = vpop.f32.mrf.mxu0
      %v410 = vadd.f32 0.0, %v409
      %v411 = vand.u32 %v284, 4294901760
      %v412 = vsub.f32 %v284, %v411
      %v413 = vand.u32 %v412, 4294901760
      %v414 = vsub.f32 %v412, %v413
      %v415 = vand.u32 %v414, 4294901760
      %416 = vmatmul.f32.gmra.mxu0 %v415
      %v417 = vpop.f32.mrf.mxu0
      %v418 = vadd.f32 0.0, %v417
      %v419 = vand.u32 %v287, 4294901760
      %v420 = vsub.f32 %v287, %v419
      %v421 = vand.u32 %v420, 4294901760
      %v422 = vsub.f32 %v420, %v421
      %v423 = vand.u32 %v422, 4294901760
      %424 = vmatmul.f32.gmra.mxu0 %v423
      %v425 = vpop.f32.mrf.mxu0
      %v426 = vadd.f32 0.0, %v425
      %v427 = vand.u32 %v290, 4294901760
      %v428 = vsub.f32 %v290, %v427
      %v429 = vand.u32 %v428, 4294901760
      %v430 = vsub.f32 %v428, %v429
      %v431 = vand.u32 %v430, 4294901760
      %432 = vmatmul.f32.gmra.mxu0 %v431
      %v433 = vpop.f32.mrf.mxu0
      %v434 = vadd.f32 0.0, %v433
      %v435 = vand.u32 %v293, 4294901760
      %v436 = vsub.f32 %v293, %v435
      %v437 = vand.u32 %v436, 4294901760
      %v438 = vsub.f32 %v436, %v437
      %v439 = vand.u32 %v438, 4294901760
      %440 = vmatmul.f32.gmra.mxu0 %v439
      %v441 = vpop.f32.mrf.mxu0
      %v442 = vadd.f32 0.0, %v441
      %v443 = vand.u32 %v296, 4294901760
      %v444 = vsub.f32 %v296, %v443
      %v445 = vand.u32 %v444, 4294901760
      %v446 = vsub.f32 %v444, %v445
      %v447 = vand.u32 %v446, 4294901760
      %448 = vmatmul.f32.gmra.mxu0 %v447
      %v449 = vpop.f32.mrf.mxu0
      %v450 = vadd.f32 0.0, %v449
      %v451 = vand.u32 %v299, 4294901760
      %v452 = vsub.f32 %v299, %v451
      %v453 = vand.u32 %v452, 4294901760
      %v454 = vsub.f32 %v452, %v453
      %v455 = vand.u32 %v454, 4294901760
      %456 = vmatmul.f32.gmra.mxu0 %v455
      %v457 = vpop.f32.mrf.mxu0
      %v458 = vadd.f32 0.0, %v457
      %v459 = vand.u32 %v302, 4294901760
      %v460 = vsub.f32 %v302, %v459
      %v461 = vand.u32 %v460, 4294901760
      %v462 = vsub.f32 %v460, %v461
      %v463 = vand.u32 %v462, 4294901760
      %464 = vmatmul.f32.gmra.mxu0 %v463
      %v465 = vpop.f32.mrf.mxu0
      %v466 = vadd.f32 0.0, %v465
      %v467 = vand.u32 %v305, 4294901760
      %v468 = vsub.f32 %v305, %v467
      %v469 = vand.u32 %v468, 4294901760
      %v470 = vsub.f32 %v468, %v469
      %v471 = vand.u32 %v470, 4294901760
      %472 = vmatmul.f32.gmra.mxu0 %v471
      %v473 = vpop.f32.mrf.mxu0
      %v474 = vadd.f32 0.0, %v473
      %v475 = vand.u32 %v308, 4294901760
      %v476 = vsub.f32 %v308, %v475
      %v477 = vand.u32 %v476, 4294901760
      %v478 = vsub.f32 %v476, %v477
      %v479 = vand.u32 %v478, 4294901760
      %480 = vmatmul.f32.gmra.mxu0 %v479
      %v481 = vpop.f32.mrf.mxu0
      %v482 = vadd.f32 0.0, %v481
      %v483 = vand.u32 %v311, 4294901760
      %v484 = vsub.f32 %v311, %v483
      %v485 = vand.u32 %v484, 4294901760
      %v486 = vsub.f32 %v484, %v485
      %v487 = vand.u32 %v486, 4294901760
      %488 = vmatmul.f32.gmra.mxu0 %v487
      %v489 = vpop.f32.mrf.mxu0
      %v490 = vadd.f32 0.0, %v489
      %v491 = vand.u32 %v314, 4294901760
      %v492 = vsub.f32 %v314, %v491
      %v493 = vand.u32 %v492, 4294901760
      %v494 = vsub.f32 %v492, %v493
      %v495 = vand.u32 %v494, 4294901760
      %496 = vmatmul.f32.gmra.mxu0 %v495
      %v497 = vpop.f32.mrf.mxu0
      %v498 = vadd.f32 0.0, %v497
      %v499 = vand.u32 %v317, 4294901760
      %v500 = vsub.f32 %v317, %v499
      %v501 = vand.u32 %v500, 4294901760
      %v502 = vsub.f32 %v500, %v501
      %v503 = vand.u32 %v502, 4294901760
      %504 = vmatmul.f32.gmra.mxu0 %v503
      %v505 = vpop.f32.mrf.mxu0
      %v506 = vadd.f32 0.0, %v505
      %v507 = vand.u32 %v320, 4294901760
      %v508 = vsub.f32 %v320, %v507
      %v509 = vand.u32 %v508, 4294901760
      %v510 = vsub.f32 %v508, %v509
      %v511 = vand.u32 %v510, 4294901760
      %512 = vmatmul.f32.gmra.mxu0 %v511
      %v513 = vpop.f32.mrf.mxu0
      %v514 = vadd.f32 0.0, %v513
      %v515 = vand.u32 %v323, 4294901760
      %v516 = vsub.f32 %v323, %v515
      %v517 = vand.u32 %v516, 4294901760
      %v518 = vsub.f32 %v516, %v517
      %v519 = vand.u32 %v518, 4294901760
      %520 = vmatmul.f32.gmra.mxu0 %v519
      %v521 = vpop.f32.mrf.mxu0
      %v522 = vadd.f32 0.0, %v521
      %v523 = vand.u32 %v326, 4294901760
      %v524 = vsub.f32 %v326, %v523
      %v525 = vand.u32 %v524, 4294901760
      %v526 = vsub.f32 %v524, %v525
      %v527 = vand.u32 %v526, 4294901760
      %528 = vmatmul.f32.gmra.mxu0 %v527
      %v529 = vpop.f32.mrf.mxu0
      %v530 = vadd.f32 0.0, %v529
      %v531 = vand.u32 %v329, 4294901760
      %v532 = vsub.f32 %v329, %v531
      %v533 = vand.u32 %v532, 4294901760
      %v534 = vsub.f32 %v532, %v533
      %v535 = vand.u32 %v534, 4294901760
      %536 = vmatmul.f32.gmra.mxu0 %v535
      %v537 = vpop.f32.mrf.mxu0
      %v538 = vadd.f32 0.0, %v537
      %v539 = vand.u32 %v332, 4294901760
      %v540 = vsub.f32 %v332, %v539
      %v541 = vand.u32 %v540, 4294901760
      %v542 = vsub.f32 %v540, %v541
      %v543 = vand.u32 %v542, 4294901760
      %544 = vmatmul.f32.gmra.mxu0 %v543
      %v545 = vpop.f32.mrf.mxu0
      %v546 = vadd.f32 0.0, %v545
      %v547 = vand.u32 %v335, 4294901760
      %v548 = vsub.f32 %v335, %v547
      %v549 = vand.u32 %v548, 4294901760
      %v550 = vsub.f32 %v548, %v549
      %v551 = vand.u32 %v550, 4294901760
      %552 = vmatmul.f32.gmra.mxu0 %v551
      %v553 = vpop.f32.mrf.mxu0
      %v554 = vadd.f32 0.0, %v553
      %v555 = vand.u32 %v338, 4294901760
      %v556 = vsub.f32 %v338, %v555
      %v557 = vand.u32 %v556, 4294901760
      %v558 = vsub.f32 %v556, %v557
      %v559 = vand.u32 %v558, 4294901760
      %560 = vmatmul.f32.gmra.mxu0 %v559
      %v561 = vpop.f32.mrf.mxu0
      %v562 = vadd.f32 0.0, %v561
      %v563 = vand.u32 %v341, 4294901760
      %v564 = vsub.f32 %v341, %v563
      %v565 = vand.u32 %v564, 4294901760
      %v566 = vsub.f32 %v564, %v565
      %v567 = vand.u32 %v566, 4294901760
      %568 = vmatmul.f32.gmra.mxu0 %v567
      %v569 = vpop.f32.mrf.mxu0
      %v570 = vadd.f32 0.0, %v569
      %v571 = vand.u32 %v344, 4294901760
      %v572 = vsub.f32 %v344, %v571
      %v573 = vand.u32 %v572, 4294901760
      %v574 = vsub.f32 %v572, %v573
      %v575 = vand.u32 %v574, 4294901760
      %576 = vmatmul.f32.gmra.mxu0 %v575
      %v577 = vpop.f32.mrf.mxu0
      %v578 = vadd.f32 0.0, %v577
      %v579 = vand.u32 %v347, 4294901760
      %v580 = vsub.f32 %v347, %v579
      %v581 = vand.u32 %v580, 4294901760
      %v582 = vsub.f32 %v580, %v581
      %v583 = vand.u32 %v582, 4294901760
      %584 = vmatmul.f32.gmra.mxu0 %v583
      %v585 = vpop.f32.mrf.mxu0
      %v586 = vadd.f32 0.0, %v585
      %v587 = vand.u32 %v350, 4294901760
      %v588 = vsub.f32 %v350, %v587
      %v589 = vand.u32 %v588, 4294901760
      %v590 = vsub.f32 %v588, %v589
      %v591 = vand.u32 %v590, 4294901760
      %592 = vmatmul.f32.gmra.mxu0 %v591
      %v593 = vpop.f32.mrf.mxu0
      %v594 = vadd.f32 0.0, %v593
      %v595 = vand.u32 %v353, 4294901760
      %v596 = vsub.f32 %v353, %v595
      %v597 = vand.u32 %v596, 4294901760
      %v598 = vsub.f32 %v596, %v597
      %v599 = vand.u32 %v598, 4294901760
      %600 = vmatmul.f32.gmra.mxu0 %v599
      %v601 = vpop.f32.mrf.mxu0
      %v602 = vadd.f32 0.0, %v601
      %v603 = vand.u32 %v356, 4294901760
      %v604 = vsub.f32 %v356, %v603
      %v605 = vand.u32 %v604, 4294901760
      %v606 = vsub.f32 %v604, %v605
      %v607 = vand.u32 %v606, 4294901760
      %608 = vmatmul.f32.gmra.mxu0 %v607
      %v609 = vpop.f32.mrf.mxu0
      %v610 = vadd.f32 0.0, %v609
      %v611 = vand.u32 %v359, 4294901760
      %v612 = vsub.f32 %v359, %v611
      %v613 = vand.u32 %v612, 4294901760
      %v614 = vsub.f32 %v612, %v613
      %v615 = vand.u32 %v614, 4294901760
      %616 = vmatmul.f32.gmra.mxu0 %v615
      %v617 = vpop.f32.mrf.mxu0
      %v618 = vadd.f32 0.0, %v617
      %v619 = vand.u32 %v362, 4294901760
      %v620 = vsub.f32 %v362, %v619
      %v621 = vand.u32 %v620, 4294901760
      %v622 = vsub.f32 %v620, %v621
      %v623 = vand.u32 %v622, 4294901760
      %624 = vmatmul.f32.gmra.mxu0 %v623
      %v625 = vpop.f32.mrf.mxu0
      %v626 = vadd.f32 0.0, %v625
      %v627 = vand.u32 %v365, 4294901760
      %v628 = vsub.f32 %v365, %v627
      %v629 = vand.u32 %v628, 4294901760
      %v630 = vsub.f32 %v628, %v629
      %v631 = vand.u32 %v630, 4294901760
      %632 = vmatmul.f32.gmra.mxu0 %v631
      %v633 = vpop.f32.mrf.mxu0
      %v634 = vadd.f32 0.0, %v633
      %v635 = vand.u32 %v368, 4294901760
      %v636 = vsub.f32 %v368, %v635
      %v637 = vand.u32 %v636, 4294901760
      %v638 = vsub.f32 %v636, %v637
      %v639 = vand.u32 %v638, 4294901760
      %640 = vmatmul.f32.gmra.mxu0 %v639
      %v641 = vpop.f32.mrf.mxu0
      %v642 = vadd.f32 0.0, %v641
      %v643 = vand.u32 %v371, 4294901760
      %v644 = vsub.f32 %v371, %v643
      %v645 = vand.u32 %v644, 4294901760
      %v646 = vsub.f32 %v644, %v645
      %v647 = vand.u32 %v646, 4294901760
      %648 = vmatmul.f32.gmra.mxu0 %v647
      %v649 = vpop.f32.mrf.mxu0
      %v650 = vadd.f32 0.0, %v649
      %651 = vdwg.mxu0
      %652 = vmatpush.msra.mxu0 0.0
      %653 = vmatpush.msra.mxu0 0.0
      %654 = vmatpush.msra.mxu0 0.0
      %655 = vmatpush.msra.mxu0 0.0
      %656 = vmatpush.msra.mxu0 0.0
      %657 = vmatpush.msra.mxu0 0.0
      %658 = vmatpush.msra.mxu0 0.0
      %659 = vmatpush.msra.mxu0 0.0
      %660 = vmatpush.msra.mxu0 0.0
      %661 = vmatpush.msra.mxu0 0.0
      %662 = vmatpush.msra.mxu0 0.0
      %663 = vmatpush.msra.mxu0 0.0
      %664 = vmatpush.msra.mxu0 0.0
      %665 = vmatpush.msra.mxu0 0.0
      %666 = vmatpush.msra.mxu0 0.0
      %v667 = vand.u32 %v374, 4294901760
      %v668 = vsub.f32 %v374, %v667
      %v669 = vand.u32 %v668, 4294901760
      %v670 = vsub.f32 %v668, %v669
      %v671 = vand.u32 %v670, 4294901760
      %672 = vmatpush.msra.mxu0 %v671
      %v673 = vand.u32 %v278, 4294901760
      %674 = vmatmul.f32.gmra.mxu0 %v673
      %v675 = vpop.f32.mrf.mxu0
      %v676 = vadd.f32 %v402, %v675
      %v677 = vand.u32 %v281, 4294901760
      %678 = vmatmul.f32.gmra.mxu0 %v677
      %v679 = vpop.f32.mrf.mxu0
      %v680 = vadd.f32 %v410, %v679
      %v681 = vand.u32 %v284, 4294901760
      %682 = vmatmul.f32.gmra.mxu0 %v681
      %v683 = vpop.f32.mrf.mxu0
      %v684 = vadd.f32 %v418, %v683
      %v685 = vand.u32 %v287, 4294901760
      %686 = vmatmul.f32.gmra.mxu0 %v685
      %v687 = vpop.f32.mrf.mxu0
      %v688 = vadd.f32 %v426, %v687
      %v689 = vand.u32 %v290, 4294901760
      %690 = vmatmul.f32.gmra.mxu0 %v689
      %v691 = vpop.f32.mrf.mxu0
      %v692 = vadd.f32 %v434, %v691
      %v693 = vand.u32 %v293, 4294901760
      %694 = vmatmul.f32.gmra.mxu0 %v693
      %v695 = vpop.f32.mrf.mxu0
      %v696 = vadd.f32 %v442, %v695
      %v697 = vand.u32 %v296, 4294901760
      %698 = vmatmul.f32.gmra.mxu0 %v697
      %v699 = vpop.f32.mrf.mxu0
      %v700 = vadd.f32 %v450, %v699
      %v701 = vand.u32 %v299, 4294901760
      %702 = vmatmul.f32.gmra.mxu0 %v701
      %v703 = vpop.f32.mrf.mxu0
      %v704 = vadd.f32 %v458, %v703
      %v705 = vand.u32 %v302, 4294901760
      %706 = vmatmul.f32.gmra.mxu0 %v705
      %v707 = vpop.f32.mrf.mxu0
      %v708 = vadd.f32 %v466, %v707
      %v709 = vand.u32 %v305, 4294901760
      %710 = vmatmul.f32.gmra.mxu0 %v709
      %v711 = vpop.f32.mrf.mxu0
      %v712 = vadd.f32 %v474, %v711
      %v713 = vand.u32 %v308, 4294901760
      %714 = vmatmul.f32.gmra.mxu0 %v713
      %v715 = vpop.f32.mrf.mxu0
      %v716 = vadd.f32 %v482, %v715
      %v717 = vand.u32 %v311, 4294901760
      %718 = vmatmul.f32.gmra.mxu0 %v717
      %v719 = vpop.f32.mrf.mxu0
      %v720 = vadd.f32 %v490, %v719
      %v721 = vand.u32 %v314, 4294901760
      %722 = vmatmul.f32.gmra.mxu0 %v721
      %v723 = vpop.f32.mrf.mxu0
      %v724 = vadd.f32 %v498, %v723
      %v725 = vand.u32 %v317, 4294901760
      %726 = vmatmul.f32.gmra.mxu0 %v725
      %v727 = vpop.f32.mrf.mxu0
      %v728 = vadd.f32 %v506, %v727
      %v729 = vand.u32 %v320, 4294901760
      %730 = vmatmul.f32.gmra.mxu0 %v729
      %v731 = vpop.f32.mrf.mxu0
      %v732 = vadd.f32 %v514, %v731
      %v733 = vand.u32 %v323, 4294901760
      %734 = vmatmul.f32.gmra.mxu0 %v733
      %v735 = vpop.f32.mrf.mxu0
      %v736 = vadd.f32 %v522, %v735
      %v737 = vand.u32 %v326, 4294901760
      %738 = vmatmul.f32.gmra.mxu0 %v737
      %v739 = vpop.f32.mrf.mxu0
      %v740 = vadd.f32 %v530, %v739
      %v741 = vand.u32 %v329, 4294901760
      %742 = vmatmul.f32.gmra.mxu0 %v741
      %v743 = vpop.f32.mrf.mxu0
      %v744 = vadd.f32 %v538, %v743
      %v745 = vand.u32 %v332, 4294901760
      %746 = vmatmul.f32.gmra.mxu0 %v745
      %v747 = vpop.f32.mrf.mxu0
      %v748 = vadd.f32 %v546, %v747
      %v749 = vand.u32 %v335, 4294901760
      %750 = vmatmul.f32.gmra.mxu0 %v749
      %v751 = vpop.f32.mrf.mxu0
      %v752 = vadd.f32 %v554, %v751
      %v753 = vand.u32 %v338, 4294901760
      %754 = vmatmul.f32.gmra.mxu0 %v753
      %v755 = vpop.f32.mrf.mxu0
      %v756 = vadd.f32 %v562, %v755
      %v757 = vand.u32 %v341, 4294901760
      %758 = vmatmul.f32.gmra.mxu0 %v757
      %v759 = vpop.f32.mrf.mxu0
      %v760 = vadd.f32 %v570, %v759
      %v761 = vand.u32 %v344, 4294901760
      %762 = vmatmul.f32.gmra.mxu0 %v761
      %v763 = vpop.f32.mrf.mxu0
      %v764 = vadd.f32 %v578, %v763
      %v765 = vand.u32 %v347, 4294901760
      %766 = vmatmul.f32.gmra.mxu0 %v765
      %v767 = vpop.f32.mrf.mxu0
      %v768 = vadd.f32 %v586, %v767
      %v769 = vand.u32 %v350, 4294901760
      %770 = vmatmul.f32.gmra.mxu0 %v769
      %v771 = vpop.f32.mrf.mxu0
      %v772 = vadd.f32 %v594, %v771
      %v773 = vand.u32 %v353, 4294901760
      %774 = vmatmul.f32.gmra.mxu0 %v773
      %v775 = vpop.f32.mrf.mxu0
      %v776 = vadd.f32 %v602, %v775
      %v777 = vand.u32 %v356, 4294901760
      %778 = vmatmul.f32.gmra.mxu0 %v777
      %v779 = vpop.f32.mrf.mxu0
      %v780 = vadd.f32 %v610, %v779
      %v781 = vand.u32 %v359, 4294901760
      %782 = vmatmul.f32.gmra.mxu0 %v781
      %v783 = vpop.f32.mrf.mxu0
      %v784 = vadd.f32 %v618, %v783
      %v785 = vand.u32 %v362, 4294901760
      %786 = vmatmul.f32.gmra.mxu0 %v785
      %v787 = vpop.f32.mrf.mxu0
      %v788 = vadd.f32 %v626, %v787
      %v789 = vand.u32 %v365, 4294901760
      %790 = vmatmul.f32.gmra.mxu0 %v789
      %v791 = vpop.f32.mrf.mxu0
      %v792 = vadd.f32 %v634, %v791
      %v793 = vand.u32 %v368, 4294901760
      %794 = vmatmul.f32.gmra.mxu0 %v793
      %v795 = vpop.f32.mrf.mxu0
      %v796 = vadd.f32 %v642, %v795
      %v797 = vand.u32 %v371, 4294901760
      %798 = vmatmul.f32.gmra.mxu0 %v797
      %v799 = vpop.f32.mrf.mxu0
      %v800 = vadd.f32 %v650, %v799
      %801 = vdwg.mxu0
      %802 = vmatpush.msra.mxu0 0.0
      %803 = vmatpush.msra.mxu0 0.0
      %804 = vmatpush.msra.mxu0 0.0
      %805 = vmatpush.msra.mxu0 0.0
      %806 = vmatpush.msra.mxu0 0.0
      %807 = vmatpush.msra.mxu0 0.0
      %808 = vmatpush.msra.mxu0 0.0
      %809 = vmatpush.msra.mxu0 0.0
      %810 = vmatpush.msra.mxu0 0.0
      %811 = vmatpush.msra.mxu0 0.0
      %812 = vmatpush.msra.mxu0 0.0
      %813 = vmatpush.msra.mxu0 0.0
      %814 = vmatpush.msra.mxu0 0.0
      %815 = vmatpush.msra.mxu0 0.0
      %816 = vmatpush.msra.mxu0 0.0
      %v817 = vand.u32 %v374, 4294901760
      %v818 = vsub.f32 %v374, %v817
      %819 = vmatpush.msra.mxu0 %v818
      %v820 = vand.u32 %v278, 4294901760
      %v821 = vsub.f32 %v278, %v820
      %822 = vmatmul.f32.gmra.mxu0 %v821
      %v823 = vpop.f32.mrf.mxu0
      %v824 = vadd.f32 %v676, %v823
      %v825 = vand.u32 %v281, 4294901760
      %v826 = vsub.f32 %v281, %v825
      %827 = vmatmul.f32.gmra.mxu0 %v826
      %v828 = vpop.f32.mrf.mxu0
      %v829 = vadd.f32 %v680, %v828
      %v830 = vand.u32 %v284, 4294901760
      %v831 = vsub.f32 %v284, %v830
      %832 = vmatmul.f32.gmra.mxu0 %v831
      %v833 = vpop.f32.mrf.mxu0
      %v834 = vadd.f32 %v684, %v833
      %v835 = vand.u32 %v287, 4294901760
      %v836 = vsub.f32 %v287, %v835
      %837 = vmatmul.f32.gmra.mxu0 %v836
      %v838 = vpop.f32.mrf.mxu0
      %v839 = vadd.f32 %v688, %v838
      %v840 = vand.u32 %v290, 4294901760
      %v841 = vsub.f32 %v290, %v840
      %842 = vmatmul.f32.gmra.mxu0 %v841
      %v843 = vpop.f32.mrf.mxu0
      %v844 = vadd.f32 %v692, %v843
      %v845 = vand.u32 %v293, 4294901760
      %v846 = vsub.f32 %v293, %v845
      %847 = vmatmul.f32.gmra.mxu0 %v846
      %v848 = vpop.f32.mrf.mxu0
      %v849 = vadd.f32 %v696, %v848
      %v850 = vand.u32 %v296, 4294901760
      %v851 = vsub.f32 %v296, %v850
      %852 = vmatmul.f32.gmra.mxu0 %v851
      %v853 = vpop.f32.mrf.mxu0
      %v854 = vadd.f32 %v700, %v853
      %v855 = vand.u32 %v299, 4294901760
      %v856 = vsub.f32 %v299, %v855
      %857 = vmatmul.f32.gmra.mxu0 %v856
      %v858 = vpop.f32.mrf.mxu0
      %v859 = vadd.f32 %v704, %v858
      %v860 = vand.u32 %v302, 4294901760
      %v861 = vsub.f32 %v302, %v860
      %862 = vmatmul.f32.gmra.mxu0 %v861
      %v863 = vpop.f32.mrf.mxu0
      %v864 = vadd.f32 %v708, %v863
      %v865 = vand.u32 %v305, 4294901760
      %v866 = vsub.f32 %v305, %v865
      %867 = vmatmul.f32.gmra.mxu0 %v866
      %v868 = vpop.f32.mrf.mxu0
      %v869 = vadd.f32 %v712, %v868
      %v870 = vand.u32 %v308, 4294901760
      %v871 = vsub.f32 %v308, %v870
      %872 = vmatmul.f32.gmra.mxu0 %v871
      %v873 = vpop.f32.mrf.mxu0
      %v874 = vadd.f32 %v716, %v873
      %v875 = vand.u32 %v311, 4294901760
      %v876 = vsub.f32 %v311, %v875
      %877 = vmatmul.f32.gmra.mxu0 %v876
      %v878 = vpop.f32.mrf.mxu0
      %v879 = vadd.f32 %v720, %v878
      %v880 = vand.u32 %v314, 4294901760
      %v881 = vsub.f32 %v314, %v880
      %882 = vmatmul.f32.gmra.mxu0 %v881
      %v883 = vpop.f32.mrf.mxu0
      %v884 = vadd.f32 %v724, %v883
      %v885 = vand.u32 %v317, 4294901760
      %v886 = vsub.f32 %v317, %v885
      %887 = vmatmul.f32.gmra.mxu0 %v886
      %v888 = vpop.f32.mrf.mxu0
      %v889 = vadd.f32 %v728, %v888
      %v890 = vand.u32 %v320, 4294901760
      %v891 = vsub.f32 %v320, %v890
      %892 = vmatmul.f32.gmra.mxu0 %v891
      %v893 = vpop.f32.mrf.mxu0
      %v894 = vadd.f32 %v732, %v893
      %v895 = vand.u32 %v323, 4294901760
      %v896 = vsub.f32 %v323, %v895
      %897 = vmatmul.f32.gmra.mxu0 %v896
      %v898 = vpop.f32.mrf.mxu0
      %v899 = vadd.f32 %v736, %v898
      %v900 = vand.u32 %v326, 4294901760
      %v901 = vsub.f32 %v326, %v900
      %902 = vmatmul.f32.gmra.mxu0 %v901
      %v903 = vpop.f32.mrf.mxu0
      %v904 = vadd.f32 %v740, %v903
      %v905 = vand.u32 %v329, 4294901760
      %v906 = vsub.f32 %v329, %v905
      %907 = vmatmul.f32.gmra.mxu0 %v906
      %v908 = vpop.f32.mrf.mxu0
      %v909 = vadd.f32 %v744, %v908
      %v910 = vand.u32 %v332, 4294901760
      %v911 = vsub.f32 %v332, %v910
      %912 = vmatmul.f32.gmra.mxu0 %v911
      %v913 = vpop.f32.mrf.mxu0
      %v914 = vadd.f32 %v748, %v913
      %v915 = vand.u32 %v335, 4294901760
      %v916 = vsub.f32 %v335, %v915
      %917 = vmatmul.f32.gmra.mxu0 %v916
      %v918 = vpop.f32.mrf.mxu0
      %v919 = vadd.f32 %v752, %v918
      %v920 = vand.u32 %v338, 4294901760
      %v921 = vsub.f32 %v338, %v920
      %922 = vmatmul.f32.gmra.mxu0 %v921
      %v923 = vpop.f32.mrf.mxu0
      %v924 = vadd.f32 %v756, %v923
      %v925 = vand.u32 %v341, 4294901760
      %v926 = vsub.f32 %v341, %v925
      %927 = vmatmul.f32.gmra.mxu0 %v926
      %v928 = vpop.f32.mrf.mxu0
      %v929 = vadd.f32 %v760, %v928
      %v930 = vand.u32 %v344, 4294901760
      %v931 = vsub.f32 %v344, %v930
      %932 = vmatmul.f32.gmra.mxu0 %v931
      %v933 = vpop.f32.mrf.mxu0
      %v934 = vadd.f32 %v764, %v933
      %v935 = vand.u32 %v347, 4294901760
      %v936 = vsub.f32 %v347, %v935
      %937 = vmatmul.f32.gmra.mxu0 %v936
      %v938 = vpop.f32.mrf.mxu0
      %v939 = vadd.f32 %v768, %v938
      %v940 = vand.u32 %v350, 4294901760
      %v941 = vsub.f32 %v350, %v940
      %942 = vmatmul.f32.gmra.mxu0 %v941
      %v943 = vpop.f32.mrf.mxu0
      %v944 = vadd.f32 %v772, %v943
      %v945 = vand.u32 %v353, 4294901760
      %v946 = vsub.f32 %v353, %v945
      %947 = vmatmul.f32.gmra.mxu0 %v946
      %v948 = vpop.f32.mrf.mxu0
      %v949 = vadd.f32 %v776, %v948
      %v950 = vand.u32 %v356, 4294901760
      %v951 = vsub.f32 %v356, %v950
      %952 = vmatmul.f32.gmra.mxu0 %v951
      %v953 = vpop.f32.mrf.mxu0
      %v954 = vadd.f32 %v780, %v953
      %v955 = vand.u32 %v359, 4294901760
      %v956 = vsub.f32 %v359, %v955
      %957 = vmatmul.f32.gmra.mxu0 %v956
      %v958 = vpop.f32.mrf.mxu0
      %v959 = vadd.f32 %v784, %v958
      %v960 = vand.u32 %v362, 4294901760
      %v961 = vsub.f32 %v362, %v960
      %962 = vmatmul.f32.gmra.mxu0 %v961
      %v963 = vpop.f32.mrf.mxu0
      %v964 = vadd.f32 %v788, %v963
      %v965 = vand.u32 %v365, 4294901760
      %v966 = vsub.f32 %v365, %v965
      %967 = vmatmul.f32.gmra.mxu0 %v966
      %v968 = vpop.f32.mrf.mxu0
      %v969 = vadd.f32 %v792, %v968
      %v970 = vand.u32 %v368, 4294901760
      %v971 = vsub.f32 %v368, %v970
      %972 = vmatmul.f32.gmra.mxu0 %v971
      %v973 = vpop.f32.mrf.mxu0
      %v974 = vadd.f32 %v796, %v973
      %v975 = vand.u32 %v371, 4294901760
      %v976 = vsub.f32 %v371, %v975
      %977 = vmatmul.f32.gmra.mxu0 %v976
      %v978 = vpop.f32.mrf.mxu0
      %v979 = vadd.f32 %v800, %v978
      %980 = vdwg.mxu0
      %981 = vmatpush.msra.mxu0 0.0
      %982 = vmatpush.msra.mxu0 0.0
      %983 = vmatpush.msra.mxu0 0.0
      %984 = vmatpush.msra.mxu0 0.0
      %985 = vmatpush.msra.mxu0 0.0
      %986 = vmatpush.msra.mxu0 0.0
      %987 = vmatpush.msra.mxu0 0.0
      %988 = vmatpush.msra.mxu0 0.0
      %989 = vmatpush.msra.mxu0 0.0
      %990 = vmatpush.msra.mxu0 0.0
      %991 = vmatpush.msra.mxu0 0.0
      %992 = vmatpush.msra.mxu0 0.0
      %993 = vmatpush.msra.mxu0 0.0
      %994 = vmatpush.msra.mxu0 0.0
      %995 = vmatpush.msra.mxu0 0.0
      %v996 = vand.u32 %v374, 4294901760
      %997 = vmatpush.msra.mxu0 %v996
      %v998 = vand.u32 %v278, 4294901760
      %v999 = vsub.f32 %v278, %v998
      %v1000 = vand.u32 %v999, 4294901760
      %1001 = vmatmul.f32.gmra.mxu0 %v1000
      %v1002 = vpop.f32.mrf.mxu0
      %v1003 = vadd.f32 %v824, %v1002
      %v1004 = vand.u32 %v281, 4294901760
      %v1005 = vsub.f32 %v281, %v1004
      %v1006 = vand.u32 %v1005, 4294901760
      %1007 = vmatmul.f32.gmra.mxu0 %v1006
      %v1008 = vpop.f32.mrf.mxu0
      %v1009 = vadd.f32 %v829, %v1008
      %v1010 = vand.u32 %v284, 4294901760
      %v1011 = vsub.f32 %v284, %v1010
      %v1012 = vand.u32 %v1011, 4294901760
      %1013 = vmatmul.f32.gmra.mxu0 %v1012
      %v1014 = vpop.f32.mrf.mxu0
      %v1015 = vadd.f32 %v834, %v1014
      %v1016 = vand.u32 %v287, 4294901760
      %v1017 = vsub.f32 %v287, %v1016
      %v1018 = vand.u32 %v1017, 4294901760
      %1019 = vmatmul.f32.gmra.mxu0 %v1018
      %v1020 = vpop.f32.mrf.mxu0
      %v1021 = vadd.f32 %v839, %v1020
      %v1022 = vand.u32 %v290, 4294901760
      %v1023 = vsub.f32 %v290, %v1022
      %v1024 = vand.u32 %v1023, 4294901760
      %1025 = vmatmul.f32.gmra.mxu0 %v1024
      %v1026 = vpop.f32.mrf.mxu0
      %v1027 = vadd.f32 %v844, %v1026
      %v1028 = vand.u32 %v293, 4294901760
      %v1029 = vsub.f32 %v293, %v1028
      %v1030 = vand.u32 %v1029, 4294901760
      %1031 = vmatmul.f32.gmra.mxu0 %v1030
      %v1032 = vpop.f32.mrf.mxu0
      %v1033 = vadd.f32 %v849, %v1032
      %v1034 = vand.u32 %v296, 4294901760
      %v1035 = vsub.f32 %v296, %v1034
      %v1036 = vand.u32 %v1035, 4294901760
      %1037 = vmatmul.f32.gmra.mxu0 %v1036
      %v1038 = vpop.f32.mrf.mxu0
      %v1039 = vadd.f32 %v854, %v1038
      %v1040 = vand.u32 %v299, 4294901760
      %v1041 = vsub.f32 %v299, %v1040
      %v1042 = vand.u32 %v1041, 4294901760
      %1043 = vmatmul.f32.gmra.mxu0 %v1042
      %v1044 = vpop.f32.mrf.mxu0
      %v1045 = vadd.f32 %v859, %v1044
      %v1046 = vand.u32 %v302, 4294901760
      %v1047 = vsub.f32 %v302, %v1046
      %v1048 = vand.u32 %v1047, 4294901760
      %1049 = vmatmul.f32.gmra.mxu0 %v1048
      %v1050 = vpop.f32.mrf.mxu0
      %v1051 = vadd.f32 %v864, %v1050
      %v1052 = vand.u32 %v305, 4294901760
      %v1053 = vsub.f32 %v305, %v1052
      %v1054 = vand.u32 %v1053, 4294901760
      %1055 = vmatmul.f32.gmra.mxu0 %v1054
      %v1056 = vpop.f32.mrf.mxu0
      %v1057 = vadd.f32 %v869, %v1056
      %v1058 = vand.u32 %v308, 4294901760
      %v1059 = vsub.f32 %v308, %v1058
      %v1060 = vand.u32 %v1059, 4294901760
      %1061 = vmatmul.f32.gmra.mxu0 %v1060
      %v1062 = vpop.f32.mrf.mxu0
      %v1063 = vadd.f32 %v874, %v1062
      %v1064 = vand.u32 %v311, 4294901760
      %v1065 = vsub.f32 %v311, %v1064
      %v1066 = vand.u32 %v1065, 4294901760
      %1067 = vmatmul.f32.gmra.mxu0 %v1066
      %v1068 = vpop.f32.mrf.mxu0
      %v1069 = vadd.f32 %v879, %v1068
      %v1070 = vand.u32 %v314, 4294901760
      %v1071 = vsub.f32 %v314, %v1070
      %v1072 = vand.u32 %v1071, 4294901760
      %1073 = vmatmul.f32.gmra.mxu0 %v1072
      %v1074 = vpop.f32.mrf.mxu0
      %v1075 = vadd.f32 %v884, %v1074
      %v1076 = vand.u32 %v317, 4294901760
      %v1077 = vsub.f32 %v317, %v1076
      %v1078 = vand.u32 %v1077, 4294901760
      %1079 = vmatmul.f32.gmra.mxu0 %v1078
      %v1080 = vpop.f32.mrf.mxu0
      %v1081 = vadd.f32 %v889, %v1080
      %v1082 = vand.u32 %v320, 4294901760
      %v1083 = vsub.f32 %v320, %v1082
      %v1084 = vand.u32 %v1083, 4294901760
      %1085 = vmatmul.f32.gmra.mxu0 %v1084
      %v1086 = vpop.f32.mrf.mxu0
      %v1087 = vadd.f32 %v894, %v1086
      %v1088 = vand.u32 %v323, 4294901760
      %v1089 = vsub.f32 %v323, %v1088
      %v1090 = vand.u32 %v1089, 4294901760
      %1091 = vmatmul.f32.gmra.mxu0 %v1090
      %v1092 = vpop.f32.mrf.mxu0
      %v1093 = vadd.f32 %v899, %v1092
      %v1094 = vand.u32 %v326, 4294901760
      %v1095 = vsub.f32 %v326, %v1094
      %v1096 = vand.u32 %v1095, 4294901760
      %1097 = vmatmul.f32.gmra.mxu0 %v1096
      %v1098 = vpop.f32.mrf.mxu0
      %v1099 = vadd.f32 %v904, %v1098
      %v1100 = vand.u32 %v329, 4294901760
      %v1101 = vsub.f32 %v329, %v1100
      %v1102 = vand.u32 %v1101, 4294901760
      %1103 = vmatmul.f32.gmra.mxu0 %v1102
      %v1104 = vpop.f32.mrf.mxu0
      %v1105 = vadd.f32 %v909, %v1104
      %v1106 = vand.u32 %v332, 4294901760
      %v1107 = vsub.f32 %v332, %v1106
      %v1108 = vand.u32 %v1107, 4294901760
      %1109 = vmatmul.f32.gmra.mxu0 %v1108
      %v1110 = vpop.f32.mrf.mxu0
      %v1111 = vadd.f32 %v914, %v1110
      %v1112 = vand.u32 %v335, 4294901760
      %v1113 = vsub.f32 %v335, %v1112
      %v1114 = vand.u32 %v1113, 4294901760
      %1115 = vmatmul.f32.gmra.mxu0 %v1114
      %v1116 = vpop.f32.mrf.mxu0
      %v1117 = vadd.f32 %v919, %v1116
      %v1118 = vand.u32 %v338, 4294901760
      %v1119 = vsub.f32 %v338, %v1118
      %v1120 = vand.u32 %v1119, 4294901760
      %1121 = vmatmul.f32.gmra.mxu0 %v1120
      %v1122 = vpop.f32.mrf.mxu0
      %v1123 = vadd.f32 %v924, %v1122
      %v1124 = vand.u32 %v341, 4294901760
      %v1125 = vsub.f32 %v341, %v1124
      %v1126 = vand.u32 %v1125, 4294901760
      %1127 = vmatmul.f32.gmra.mxu0 %v1126
      %v1128 = vpop.f32.mrf.mxu0
      %v1129 = vadd.f32 %v929, %v1128
      %v1130 = vand.u32 %v344, 4294901760
      %v1131 = vsub.f32 %v344, %v1130
      %v1132 = vand.u32 %v1131, 4294901760
      %1133 = vmatmul.f32.gmra.mxu0 %v1132
      %v1134 = vpop.f32.mrf.mxu0
      %v1135 = vadd.f32 %v934, %v1134
      %v1136 = vand.u32 %v347, 4294901760
      %v1137 = vsub.f32 %v347, %v1136
      %v1138 = vand.u32 %v1137, 4294901760
      %1139 = vmatmul.f32.gmra.mxu0 %v1138
      %v1140 = vpop.f32.mrf.mxu0
      %v1141 = vadd.f32 %v939, %v1140
      %v1142 = vand.u32 %v350, 4294901760
      %v1143 = vsub.f32 %v350, %v1142
      %v1144 = vand.u32 %v1143, 4294901760
      %1145 = vmatmul.f32.gmra.mxu0 %v1144
      %v1146 = vpop.f32.mrf.mxu0
      %v1147 = vadd.f32 %v944, %v1146
      %v1148 = vand.u32 %v353, 4294901760
      %v1149 = vsub.f32 %v353, %v1148
      %v1150 = vand.u32 %v1149, 4294901760
      %1151 = vmatmul.f32.gmra.mxu0 %v1150
      %v1152 = vpop.f32.mrf.mxu0
      %v1153 = vadd.f32 %v949, %v1152
      %v1154 = vand.u32 %v356, 4294901760
      %v1155 = vsub.f32 %v356, %v1154
      %v1156 = vand.u32 %v1155, 4294901760
      %1157 = vmatmul.f32.gmra.mxu0 %v1156
      %v1158 = vpop.f32.mrf.mxu0
      %v1159 = vadd.f32 %v954, %v1158
      %v1160 = vand.u32 %v359, 4294901760
      %v1161 = vsub.f32 %v359, %v1160
      %v1162 = vand.u32 %v1161, 4294901760
      %1163 = vmatmul.f32.gmra.mxu0 %v1162
      %v1164 = vpop.f32.mrf.mxu0
      %v1165 = vadd.f32 %v959, %v1164
      %v1166 = vand.u32 %v362, 4294901760
      %v1167 = vsub.f32 %v362, %v1166
      %v1168 = vand.u32 %v1167, 4294901760
      %1169 = vmatmul.f32.gmra.mxu0 %v1168
      %v1170 = vpop.f32.mrf.mxu0
      %v1171 = vadd.f32 %v964, %v1170
      %v1172 = vand.u32 %v365, 4294901760
      %v1173 = vsub.f32 %v365, %v1172
      %v1174 = vand.u32 %v1173, 4294901760
      %1175 = vmatmul.f32.gmra.mxu0 %v1174
      %v1176 = vpop.f32.mrf.mxu0
      %v1177 = vadd.f32 %v969, %v1176
      %v1178 = vand.u32 %v368, 4294901760
      %v1179 = vsub.f32 %v368, %v1178
      %v1180 = vand.u32 %v1179, 4294901760
      %1181 = vmatmul.f32.gmra.mxu0 %v1180
      %v1182 = vpop.f32.mrf.mxu0
      %v1183 = vadd.f32 %v974, %v1182
      %v1184 = vand.u32 %v371, 4294901760
      %v1185 = vsub.f32 %v371, %v1184
      %v1186 = vand.u32 %v1185, 4294901760
      %1187 = vmatmul.f32.gmra.mxu0 %v1186
      %v1188 = vpop.f32.mrf.mxu0
      %v1189 = vadd.f32 %v979, %v1188
      %1190 = vdwg.mxu0
      %1191 = vmatpush.msra.mxu0 0.0
      %1192 = vmatpush.msra.mxu0 0.0
      %1193 = vmatpush.msra.mxu0 0.0
      %1194 = vmatpush.msra.mxu0 0.0
      %1195 = vmatpush.msra.mxu0 0.0
      %1196 = vmatpush.msra.mxu0 0.0
      %1197 = vmatpush.msra.mxu0 0.0
      %1198 = vmatpush.msra.mxu0 0.0
      %1199 = vmatpush.msra.mxu0 0.0
      %1200 = vmatpush.msra.mxu0 0.0
      %1201 = vmatpush.msra.mxu0 0.0
      %1202 = vmatpush.msra.mxu0 0.0
      %1203 = vmatpush.msra.mxu0 0.0
      %1204 = vmatpush.msra.mxu0 0.0
      %1205 = vmatpush.msra.mxu0 0.0
      %v1206 = vand.u32 %v374, 4294901760
      %v1207 = vsub.f32 %v374, %v1206
      %v1208 = vand.u32 %v1207, 4294901760
      %1209 = vmatpush.msra.mxu0 %v1208
      %v1210 = vand.u32 %v278, 4294901760
      %1211 = vmatmul.f32.gmra.mxu0 %v1210
      %v1212 = vpop.f32.mrf.mxu0
      %v1213 = vadd.f32 %v1003, %v1212
      %v1214 = vand.u32 %v281, 4294901760
      %1215 = vmatmul.f32.gmra.mxu0 %v1214
      %v1216 = vpop.f32.mrf.mxu0
      %v1217 = vadd.f32 %v1009, %v1216
      %v1218 = vand.u32 %v284, 4294901760
      %1219 = vmatmul.f32.gmra.mxu0 %v1218
      %v1220 = vpop.f32.mrf.mxu0
      %v1221 = vadd.f32 %v1015, %v1220
      %v1222 = vand.u32 %v287, 4294901760
      %1223 = vmatmul.f32.gmra.mxu0 %v1222
      %v1224 = vpop.f32.mrf.mxu0
      %v1225 = vadd.f32 %v1021, %v1224
      %v1226 = vand.u32 %v290, 4294901760
      %1227 = vmatmul.f32.gmra.mxu0 %v1226
      %v1228 = vpop.f32.mrf.mxu0
      %v1229 = vadd.f32 %v1027, %v1228
      %v1230 = vand.u32 %v293, 4294901760
      %1231 = vmatmul.f32.gmra.mxu0 %v1230
      %v1232 = vpop.f32.mrf.mxu0
      %v1233 = vadd.f32 %v1033, %v1232
      %v1234 = vand.u32 %v296, 4294901760
      %1235 = vmatmul.f32.gmra.mxu0 %v1234
      %v1236 = vpop.f32.mrf.mxu0
      %v1237 = vadd.f32 %v1039, %v1236
      %v1238 = vand.u32 %v299, 4294901760
      %1239 = vmatmul.f32.gmra.mxu0 %v1238
      %v1240 = vpop.f32.mrf.mxu0
      %v1241 = vadd.f32 %v1045, %v1240
      %v1242 = vand.u32 %v302, 4294901760
      %1243 = vmatmul.f32.gmra.mxu0 %v1242
      %v1244 = vpop.f32.mrf.mxu0
      %v1245 = vadd.f32 %v1051, %v1244
      %v1246 = vand.u32 %v305, 4294901760
      %1247 = vmatmul.f32.gmra.mxu0 %v1246
      %v1248 = vpop.f32.mrf.mxu0
      %v1249 = vadd.f32 %v1057, %v1248
      %v1250 = vand.u32 %v308, 4294901760
      %1251 = vmatmul.f32.gmra.mxu0 %v1250
      %v1252 = vpop.f32.mrf.mxu0
      %v1253 = vadd.f32 %v1063, %v1252
      %v1254 = vand.u32 %v311, 4294901760
      %1255 = vmatmul.f32.gmra.mxu0 %v1254
      %v1256 = vpop.f32.mrf.mxu0
      %v1257 = vadd.f32 %v1069, %v1256
      %v1258 = vand.u32 %v314, 4294901760
      %1259 = vmatmul.f32.gmra.mxu0 %v1258
      %v1260 = vpop.f32.mrf.mxu0
      %v1261 = vadd.f32 %v1075, %v1260
      %v1262 = vand.u32 %v317, 4294901760
      %1263 = vmatmul.f32.gmra.mxu0 %v1262
      %v1264 = vpop.f32.mrf.mxu0
      %v1265 = vadd.f32 %v1081, %v1264
      %v1266 = vand.u32 %v320, 4294901760
      %1267 = vmatmul.f32.gmra.mxu0 %v1266
      %v1268 = vpop.f32.mrf.mxu0
      %v1269 = vadd.f32 %v1087, %v1268
      %v1270 = vand.u32 %v323, 4294901760
      %1271 = vmatmul.f32.gmra.mxu0 %v1270
      %v1272 = vpop.f32.mrf.mxu0
      %v1273 = vadd.f32 %v1093, %v1272
      %v1274 = vand.u32 %v326, 4294901760
      %1275 = vmatmul.f32.gmra.mxu0 %v1274
      %v1276 = vpop.f32.mrf.mxu0
      %v1277 = vadd.f32 %v1099, %v1276
      %v1278 = vand.u32 %v329, 4294901760
      %1279 = vmatmul.f32.gmra.mxu0 %v1278
      %v1280 = vpop.f32.mrf.mxu0
      %v1281 = vadd.f32 %v1105, %v1280
      %v1282 = vand.u32 %v332, 4294901760
      %1283 = vmatmul.f32.gmra.mxu0 %v1282
      %v1284 = vpop.f32.mrf.mxu0
      %v1285 = vadd.f32 %v1111, %v1284
      %v1286 = vand.u32 %v335, 4294901760
      %1287 = vmatmul.f32.gmra.mxu0 %v1286
      %v1288 = vpop.f32.mrf.mxu0
      %v1289 = vadd.f32 %v1117, %v1288
      %v1290 = vand.u32 %v338, 4294901760
      %1291 = vmatmul.f32.gmra.mxu0 %v1290
      %v1292 = vpop.f32.mrf.mxu0
      %v1293 = vadd.f32 %v1123, %v1292
      %v1294 = vand.u32 %v341, 4294901760
      %1295 = vmatmul.f32.gmra.mxu0 %v1294
      %v1296 = vpop.f32.mrf.mxu0
      %v1297 = vadd.f32 %v1129, %v1296
      %v1298 = vand.u32 %v344, 4294901760
      %1299 = vmatmul.f32.gmra.mxu0 %v1298
      %v1300 = vpop.f32.mrf.mxu0
      %v1301 = vadd.f32 %v1135, %v1300
      %v1302 = vand.u32 %v347, 4294901760
      %1303 = vmatmul.f32.gmra.mxu0 %v1302
      %v1304 = vpop.f32.mrf.mxu0
      %v1305 = vadd.f32 %v1141, %v1304
      %v1306 = vand.u32 %v350, 4294901760
      %1307 = vmatmul.f32.gmra.mxu0 %v1306
      %v1308 = vpop.f32.mrf.mxu0
      %v1309 = vadd.f32 %v1147, %v1308
      %v1310 = vand.u32 %v353, 4294901760
      %1311 = vmatmul.f32.gmra.mxu0 %v1310
      %v1312 = vpop.f32.mrf.mxu0
      %v1313 = vadd.f32 %v1153, %v1312
      %v1314 = vand.u32 %v356, 4294901760
      %1315 = vmatmul.f32.gmra.mxu0 %v1314
      %v1316 = vpop.f32.mrf.mxu0
      %v1317 = vadd.f32 %v1159, %v1316
      %v1318 = vand.u32 %v359, 4294901760
      %1319 = vmatmul.f32.gmra.mxu0 %v1318
      %v1320 = vpop.f32.mrf.mxu0
      %v1321 = vadd.f32 %v1165, %v1320
      %v1322 = vand.u32 %v362, 4294901760
      %1323 = vmatmul.f32.gmra.mxu0 %v1322
      %v1324 = vpop.f32.mrf.mxu0
      %v1325 = vadd.f32 %v1171, %v1324
      %v1326 = vand.u32 %v365, 4294901760
      %1327 = vmatmul.f32.gmra.mxu0 %v1326
      %v1328 = vpop.f32.mrf.mxu0
      %v1329 = vadd.f32 %v1177, %v1328
      %v1330 = vand.u32 %v368, 4294901760
      %1331 = vmatmul.f32.gmra.mxu0 %v1330
      %v1332 = vpop.f32.mrf.mxu0
      %v1333 = vadd.f32 %v1183, %v1332
      %v1334 = vand.u32 %v371, 4294901760
      %1335 = vmatmul.f32.gmra.mxu0 %v1334
      %v1336 = vpop.f32.mrf.mxu0
      %v1337 = vadd.f32 %v1189, %v1336
      %1338 = vdwg.mxu0
      %1339 = vmatpush.msra.mxu0 0.0
      %1340 = vmatpush.msra.mxu0 0.0
      %1341 = vmatpush.msra.mxu0 0.0
      %1342 = vmatpush.msra.mxu0 0.0
      %1343 = vmatpush.msra.mxu0 0.0
      %1344 = vmatpush.msra.mxu0 0.0
      %1345 = vmatpush.msra.mxu0 0.0
      %1346 = vmatpush.msra.mxu0 0.0
      %1347 = vmatpush.msra.mxu0 0.0
      %1348 = vmatpush.msra.mxu0 0.0
      %1349 = vmatpush.msra.mxu0 0.0
      %1350 = vmatpush.msra.mxu0 0.0
      %1351 = vmatpush.msra.mxu0 0.0
      %1352 = vmatpush.msra.mxu0 0.0
      %1353 = vmatpush.msra.mxu0 0.0
      %v1354 = vand.u32 %v374, 4294901760
      %1355 = vmatpush.msra.mxu0 %v1354
      %v1356 = vand.u32 %v278, 4294901760
      %1357 = vmatmul.f32.gmra.mxu0 %v1356
      %v1358 = vpop.f32.mrf.mxu0
      %v1359 = vadd.f32 %v1213, %v1358
      %v1360 = vand.u32 %v281, 4294901760
      %1361 = vmatmul.f32.gmra.mxu0 %v1360
      %v1362 = vpop.f32.mrf.mxu0
      %v1363 = vadd.f32 %v1217, %v1362
      %v1364 = vand.u32 %v284, 4294901760
      %1365 = vmatmul.f32.gmra.mxu0 %v1364
      %v1366 = vpop.f32.mrf.mxu0
      %v1367 = vadd.f32 %v1221, %v1366
      %v1368 = vand.u32 %v287, 4294901760
      %1369 = vmatmul.f32.gmra.mxu0 %v1368
      %v1370 = vpop.f32.mrf.mxu0
      %v1371 = vadd.f32 %v1225, %v1370
      %v1372 = vand.u32 %v290, 4294901760
      %1373 = vmatmul.f32.gmra.mxu0 %v1372
      %v1374 = vpop.f32.mrf.mxu0
      %v1375 = vadd.f32 %v1229, %v1374
      %v1376 = vand.u32 %v293, 4294901760
      %1377 = vmatmul.f32.gmra.mxu0 %v1376
      %v1378 = vpop.f32.mrf.mxu0
      %v1379 = vadd.f32 %v1233, %v1378
      %v1380 = vand.u32 %v296, 4294901760
      %1381 = vmatmul.f32.gmra.mxu0 %v1380
      %v1382 = vpop.f32.mrf.mxu0
      %v1383 = vadd.f32 %v1237, %v1382
      %v1384 = vand.u32 %v299, 4294901760
      %1385 = vmatmul.f32.gmra.mxu0 %v1384
      %v1386 = vpop.f32.mrf.mxu0
      %v1387 = vadd.f32 %v1241, %v1386
      %v1388 = vand.u32 %v302, 4294901760
      %1389 = vmatmul.f32.gmra.mxu0 %v1388
      %v1390 = vpop.f32.mrf.mxu0
      %v1391 = vadd.f32 %v1245, %v1390
      %v1392 = vand.u32 %v305, 4294901760
      %1393 = vmatmul.f32.gmra.mxu0 %v1392
      %v1394 = vpop.f32.mrf.mxu0
      %v1395 = vadd.f32 %v1249, %v1394
      %v1396 = vand.u32 %v308, 4294901760
      %1397 = vmatmul.f32.gmra.mxu0 %v1396
      %v1398 = vpop.f32.mrf.mxu0
      %v1399 = vadd.f32 %v1253, %v1398
      %v1400 = vand.u32 %v311, 4294901760
      %1401 = vmatmul.f32.gmra.mxu0 %v1400
      %v1402 = vpop.f32.mrf.mxu0
      %v1403 = vadd.f32 %v1257, %v1402
      %v1404 = vand.u32 %v314, 4294901760
      %1405 = vmatmul.f32.gmra.mxu0 %v1404
      %v1406 = vpop.f32.mrf.mxu0
      %v1407 = vadd.f32 %v1261, %v1406
      %v1408 = vand.u32 %v317, 4294901760
      %1409 = vmatmul.f32.gmra.mxu0 %v1408
      %v1410 = vpop.f32.mrf.mxu0
      %v1411 = vadd.f32 %v1265, %v1410
      %v1412 = vand.u32 %v320, 4294901760
      %1413 = vmatmul.f32.gmra.mxu0 %v1412
      %v1414 = vpop.f32.mrf.mxu0
      %v1415 = vadd.f32 %v1269, %v1414
      %v1416 = vand.u32 %v323, 4294901760
      %1417 = vmatmul.f32.gmra.mxu0 %v1416
      %v1418 = vpop.f32.mrf.mxu0
      %v1419 = vadd.f32 %v1273, %v1418
      %v1420 = vand.u32 %v326, 4294901760
      %1421 = vmatmul.f32.gmra.mxu0 %v1420
      %v1422 = vpop.f32.mrf.mxu0
      %v1423 = vadd.f32 %v1277, %v1422
      %v1424 = vand.u32 %v329, 4294901760
      %1425 = vmatmul.f32.gmra.mxu0 %v1424
      %v1426 = vpop.f32.mrf.mxu0
      %v1427 = vadd.f32 %v1281, %v1426
      %v1428 = vand.u32 %v332, 4294901760
      %1429 = vmatmul.f32.gmra.mxu0 %v1428
      %v1430 = vpop.f32.mrf.mxu0
      %v1431 = vadd.f32 %v1285, %v1430
      %v1432 = vand.u32 %v335, 4294901760
      %1433 = vmatmul.f32.gmra.mxu0 %v1432
      %v1434 = vpop.f32.mrf.mxu0
      %v1435 = vadd.f32 %v1289, %v1434
      %v1436 = vand.u32 %v338, 4294901760
      %1437 = vmatmul.f32.gmra.mxu0 %v1436
      %v1438 = vpop.f32.mrf.mxu0
      %v1439 = vadd.f32 %v1293, %v1438
      %v1440 = vand.u32 %v341, 4294901760
      %1441 = vmatmul.f32.gmra.mxu0 %v1440
      %v1442 = vpop.f32.mrf.mxu0
      %v1443 = vadd.f32 %v1297, %v1442
      %v1444 = vand.u32 %v344, 4294901760
      %1445 = vmatmul.f32.gmra.mxu0 %v1444
      %v1446 = vpop.f32.mrf.mxu0
      %v1447 = vadd.f32 %v1301, %v1446
      %v1448 = vand.u32 %v347, 4294901760
      %1449 = vmatmul.f32.gmra.mxu0 %v1448
      %v1450 = vpop.f32.mrf.mxu0
      %v1451 = vadd.f32 %v1305, %v1450
      %v1452 = vand.u32 %v350, 4294901760
      %1453 = vmatmul.f32.gmra.mxu0 %v1452
      %v1454 = vpop.f32.mrf.mxu0
      %v1455 = vadd.f32 %v1309, %v1454
      %v1456 = vand.u32 %v353, 4294901760
      %1457 = vmatmul.f32.gmra.mxu0 %v1456
      %v1458 = vpop.f32.mrf.mxu0
      %v1459 = vadd.f32 %v1313, %v1458
      %v1460 = vand.u32 %v356, 4294901760
      %1461 = vmatmul.f32.gmra.mxu0 %v1460
      %v1462 = vpop.f32.mrf.mxu0
      %v1463 = vadd.f32 %v1317, %v1462
      %v1464 = vand.u32 %v359, 4294901760
      %1465 = vmatmul.f32.gmra.mxu0 %v1464
      %v1466 = vpop.f32.mrf.mxu0
      %v1467 = vadd.f32 %v1321, %v1466
      %v1468 = vand.u32 %v362, 4294901760
      %1469 = vmatmul.f32.gmra.mxu0 %v1468
      %v1470 = vpop.f32.mrf.mxu0
      %v1471 = vadd.f32 %v1325, %v1470
      %v1472 = vand.u32 %v365, 4294901760
      %1473 = vmatmul.f32.gmra.mxu0 %v1472
      %v1474 = vpop.f32.mrf.mxu0
      %v1475 = vadd.f32 %v1329, %v1474
      %v1476 = vand.u32 %v368, 4294901760
      %1477 = vmatmul.f32.gmra.mxu0 %v1476
      %v1478 = vpop.f32.mrf.mxu0
      %v1479 = vadd.f32 %v1333, %v1478
      %v1480 = vand.u32 %v371, 4294901760
      %1481 = vmatmul.f32.gmra.mxu0 %v1480
      %v1482 = vpop.f32.mrf.mxu0
      %v1483 = vadd.f32 %v1337, %v1482
      %1484 = vdwg.mxu0
      %1485 = vmatpush.msra.mxu0 0.0
      %1486 = vmatpush.msra.mxu0 0.0
      %1487 = vmatpush.msra.mxu0 0.0
      %1488 = vmatpush.msra.mxu0 0.0
      %1489 = vmatpush.msra.mxu0 0.0
      %1490 = vmatpush.msra.mxu0 0.0
      %1491 = vmatpush.msra.mxu0 0.0
      %1492 = vmatpush.msra.mxu0 0.0
      %1493 = vmatpush.msra.mxu0 0.0
      %1494 = vmatpush.msra.mxu0 0.0
      %1495 = vmatpush.msra.mxu0 0.0
      %1496 = vmatpush.msra.mxu0 0.0
      %1497 = vmatpush.msra.mxu0 0.0
      %1498 = vmatpush.msra.mxu0 0.0
      %1499 = vmatpush.msra.mxu0 0.0
      %v1500 = vand.u32 %v376, 4294901760
      %1501 = vmatpush.msra.mxu0 %v1500
      %v1502 = vand.u32 %v278, 4294901760
      %v1503 = vsub.f32 %v278, %v1502
      %v1504 = vand.u32 %v1503, 4294901760
      %v1505 = vsub.f32 %v1503, %v1504
      %v1506 = vand.u32 %v1505, 4294901760
      %1507 = vmatmul.f32.gmra.mxu0 %v1506
      %v1508 = vpop.f32.mrf.mxu0
      %v1509 = vadd.f32 0.0, %v1508
      %v1510 = vand.u32 %v281, 4294901760
      %v1511 = vsub.f32 %v281, %v1510
      %v1512 = vand.u32 %v1511, 4294901760
      %v1513 = vsub.f32 %v1511, %v1512
      %v1514 = vand.u32 %v1513, 4294901760
      %1515 = vmatmul.f32.gmra.mxu0 %v1514
      %v1516 = vpop.f32.mrf.mxu0
      %v1517 = vadd.f32 0.0, %v1516
      %v1518 = vand.u32 %v284, 4294901760
      %v1519 = vsub.f32 %v284, %v1518
      %v1520 = vand.u32 %v1519, 4294901760
      %v1521 = vsub.f32 %v1519, %v1520
      %v1522 = vand.u32 %v1521, 4294901760
      %1523 = vmatmul.f32.gmra.mxu0 %v1522
      %v1524 = vpop.f32.mrf.mxu0
      %v1525 = vadd.f32 0.0, %v1524
      %v1526 = vand.u32 %v287, 4294901760
      %v1527 = vsub.f32 %v287, %v1526
      %v1528 = vand.u32 %v1527, 4294901760
      %v1529 = vsub.f32 %v1527, %v1528
      %v1530 = vand.u32 %v1529, 4294901760
      %1531 = vmatmul.f32.gmra.mxu0 %v1530
      %v1532 = vpop.f32.mrf.mxu0
      %v1533 = vadd.f32 0.0, %v1532
      %v1534 = vand.u32 %v290, 4294901760
      %v1535 = vsub.f32 %v290, %v1534
      %v1536 = vand.u32 %v1535, 4294901760
      %v1537 = vsub.f32 %v1535, %v1536
      %v1538 = vand.u32 %v1537, 4294901760
      %1539 = vmatmul.f32.gmra.mxu0 %v1538
      %v1540 = vpop.f32.mrf.mxu0
      %v1541 = vadd.f32 0.0, %v1540
      %v1542 = vand.u32 %v293, 4294901760
      %v1543 = vsub.f32 %v293, %v1542
      %v1544 = vand.u32 %v1543, 4294901760
      %v1545 = vsub.f32 %v1543, %v1544
      %v1546 = vand.u32 %v1545, 4294901760
      %1547 = vmatmul.f32.gmra.mxu0 %v1546
      %v1548 = vpop.f32.mrf.mxu0
      %v1549 = vadd.f32 0.0, %v1548
      %v1550 = vand.u32 %v296, 4294901760
      %v1551 = vsub.f32 %v296, %v1550
      %v1552 = vand.u32 %v1551, 4294901760
      %v1553 = vsub.f32 %v1551, %v1552
      %v1554 = vand.u32 %v1553, 4294901760
      %1555 = vmatmul.f32.gmra.mxu0 %v1554
      %v1556 = vpop.f32.mrf.mxu0
      %v1557 = vadd.f32 0.0, %v1556
      %v1558 = vand.u32 %v299, 4294901760
      %v1559 = vsub.f32 %v299, %v1558
      %v1560 = vand.u32 %v1559, 4294901760
      %v1561 = vsub.f32 %v1559, %v1560
      %v1562 = vand.u32 %v1561, 4294901760
      %1563 = vmatmul.f32.gmra.mxu0 %v1562
      %v1564 = vpop.f32.mrf.mxu0
      %v1565 = vadd.f32 0.0, %v1564
      %v1566 = vand.u32 %v302, 4294901760
      %v1567 = vsub.f32 %v302, %v1566
      %v1568 = vand.u32 %v1567, 4294901760
      %v1569 = vsub.f32 %v1567, %v1568
      %v1570 = vand.u32 %v1569, 4294901760
      %1571 = vmatmul.f32.gmra.mxu0 %v1570
      %v1572 = vpop.f32.mrf.mxu0
      %v1573 = vadd.f32 0.0, %v1572
      %v1574 = vand.u32 %v305, 4294901760
      %v1575 = vsub.f32 %v305, %v1574
      %v1576 = vand.u32 %v1575, 4294901760
      %v1577 = vsub.f32 %v1575, %v1576
      %v1578 = vand.u32 %v1577, 4294901760
      %1579 = vmatmul.f32.gmra.mxu0 %v1578
      %v1580 = vpop.f32.mrf.mxu0
      %v1581 = vadd.f32 0.0, %v1580
      %v1582 = vand.u32 %v308, 4294901760
      %v1583 = vsub.f32 %v308, %v1582
      %v1584 = vand.u32 %v1583, 4294901760
      %v1585 = vsub.f32 %v1583, %v1584
      %v1586 = vand.u32 %v1585, 4294901760
      %1587 = vmatmul.f32.gmra.mxu0 %v1586
      %v1588 = vpop.f32.mrf.mxu0
      %v1589 = vadd.f32 0.0, %v1588
      %v1590 = vand.u32 %v311, 4294901760
      %v1591 = vsub.f32 %v311, %v1590
      %v1592 = vand.u32 %v1591, 4294901760
      %v1593 = vsub.f32 %v1591, %v1592
      %v1594 = vand.u32 %v1593, 4294901760
      %1595 = vmatmul.f32.gmra.mxu0 %v1594
      %v1596 = vpop.f32.mrf.mxu0
      %v1597 = vadd.f32 0.0, %v1596
      %v1598 = vand.u32 %v314, 4294901760
      %v1599 = vsub.f32 %v314, %v1598
      %v1600 = vand.u32 %v1599, 4294901760
      %v1601 = vsub.f32 %v1599, %v1600
      %v1602 = vand.u32 %v1601, 4294901760
      %1603 = vmatmul.f32.gmra.mxu0 %v1602
      %v1604 = vpop.f32.mrf.mxu0
      %v1605 = vadd.f32 0.0, %v1604
      %v1606 = vand.u32 %v317, 4294901760
      %v1607 = vsub.f32 %v317, %v1606
      %v1608 = vand.u32 %v1607, 4294901760
      %v1609 = vsub.f32 %v1607, %v1608
      %v1610 = vand.u32 %v1609, 4294901760
      %1611 = vmatmul.f32.gmra.mxu0 %v1610
      %v1612 = vpop.f32.mrf.mxu0
      %v1613 = vadd.f32 0.0, %v1612
      %v1614 = vand.u32 %v320, 4294901760
      %v1615 = vsub.f32 %v320, %v1614
      %v1616 = vand.u32 %v1615, 4294901760
      %v1617 = vsub.f32 %v1615, %v1616
      %v1618 = vand.u32 %v1617, 4294901760
      %1619 = vmatmul.f32.gmra.mxu0 %v1618
      %v1620 = vpop.f32.mrf.mxu0
      %v1621 = vadd.f32 0.0, %v1620
      %v1622 = vand.u32 %v323, 4294901760
      %v1623 = vsub.f32 %v323, %v1622
      %v1624 = vand.u32 %v1623, 4294901760
      %v1625 = vsub.f32 %v1623, %v1624
      %v1626 = vand.u32 %v1625, 4294901760
      %1627 = vmatmul.f32.gmra.mxu0 %v1626
      %v1628 = vpop.f32.mrf.mxu0
      %v1629 = vadd.f32 0.0, %v1628
      %v1630 = vand.u32 %v326, 4294901760
      %v1631 = vsub.f32 %v326, %v1630
      %v1632 = vand.u32 %v1631, 4294901760
      %v1633 = vsub.f32 %v1631, %v1632
      %v1634 = vand.u32 %v1633, 4294901760
      %1635 = vmatmul.f32.gmra.mxu0 %v1634
      %v1636 = vpop.f32.mrf.mxu0
      %v1637 = vadd.f32 0.0, %v1636
      %v1638 = vand.u32 %v329, 4294901760
      %v1639 = vsub.f32 %v329, %v1638
      %v1640 = vand.u32 %v1639, 4294901760
      %v1641 = vsub.f32 %v1639, %v1640
      %v1642 = vand.u32 %v1641, 4294901760
      %1643 = vmatmul.f32.gmra.mxu0 %v1642
      %v1644 = vpop.f32.mrf.mxu0
      %v1645 = vadd.f32 0.0, %v1644
      %v1646 = vand.u32 %v332, 4294901760
      %v1647 = vsub.f32 %v332, %v1646
      %v1648 = vand.u32 %v1647, 4294901760
      %v1649 = vsub.f32 %v1647, %v1648
      %v1650 = vand.u32 %v1649, 4294901760
      %1651 = vmatmul.f32.gmra.mxu0 %v1650
      %v1652 = vpop.f32.mrf.mxu0
      %v1653 = vadd.f32 0.0, %v1652
      %v1654 = vand.u32 %v335, 4294901760
      %v1655 = vsub.f32 %v335, %v1654
      %v1656 = vand.u32 %v1655, 4294901760
      %v1657 = vsub.f32 %v1655, %v1656
      %v1658 = vand.u32 %v1657, 4294901760
      %1659 = vmatmul.f32.gmra.mxu0 %v1658
      %v1660 = vpop.f32.mrf.mxu0
      %v1661 = vadd.f32 0.0, %v1660
      %v1662 = vand.u32 %v338, 4294901760
      %v1663 = vsub.f32 %v338, %v1662
      %v1664 = vand.u32 %v1663, 4294901760
      %v1665 = vsub.f32 %v1663, %v1664
      %v1666 = vand.u32 %v1665, 4294901760
      %1667 = vmatmul.f32.gmra.mxu0 %v1666
      %v1668 = vpop.f32.mrf.mxu0
      %v1669 = vadd.f32 0.0, %v1668
      %v1670 = vand.u32 %v341, 4294901760
      %v1671 = vsub.f32 %v341, %v1670
      %v1672 = vand.u32 %v1671, 4294901760
      %v1673 = vsub.f32 %v1671, %v1672
      %v1674 = vand.u32 %v1673, 4294901760
      %1675 = vmatmul.f32.gmra.mxu0 %v1674
      %v1676 = vpop.f32.mrf.mxu0
      %v1677 = vadd.f32 0.0, %v1676
      %v1678 = vand.u32 %v344, 4294901760
      %v1679 = vsub.f32 %v344, %v1678
      %v1680 = vand.u32 %v1679, 4294901760
      %v1681 = vsub.f32 %v1679, %v1680
      %v1682 = vand.u32 %v1681, 4294901760
      %1683 = vmatmul.f32.gmra.mxu0 %v1682
      %v1684 = vpop.f32.mrf.mxu0
      %v1685 = vadd.f32 0.0, %v1684
      %v1686 = vand.u32 %v347, 4294901760
      %v1687 = vsub.f32 %v347, %v1686
      %v1688 = vand.u32 %v1687, 4294901760
      %v1689 = vsub.f32 %v1687, %v1688
      %v1690 = vand.u32 %v1689, 4294901760
      %1691 = vmatmul.f32.gmra.mxu0 %v1690
      %v1692 = vpop.f32.mrf.mxu0
      %v1693 = vadd.f32 0.0, %v1692
      %v1694 = vand.u32 %v350, 4294901760
      %v1695 = vsub.f32 %v350, %v1694
      %v1696 = vand.u32 %v1695, 4294901760
      %v1697 = vsub.f32 %v1695, %v1696
      %v1698 = vand.u32 %v1697, 4294901760
      %1699 = vmatmul.f32.gmra.mxu0 %v1698
      %v1700 = vpop.f32.mrf.mxu0
      %v1701 = vadd.f32 0.0, %v1700
      %v1702 = vand.u32 %v353, 4294901760
      %v1703 = vsub.f32 %v353, %v1702
      %v1704 = vand.u32 %v1703, 4294901760
      %v1705 = vsub.f32 %v1703, %v1704
      %v1706 = vand.u32 %v1705, 4294901760
      %1707 = vmatmul.f32.gmra.mxu0 %v1706
      %v1708 = vpop.f32.mrf.mxu0
      %v1709 = vadd.f32 0.0, %v1708
      %v1710 = vand.u32 %v356, 4294901760
      %v1711 = vsub.f32 %v356, %v1710
      %v1712 = vand.u32 %v1711, 4294901760
      %v1713 = vsub.f32 %v1711, %v1712
      %v1714 = vand.u32 %v1713, 4294901760
      %1715 = vmatmul.f32.gmra.mxu0 %v1714
      %v1716 = vpop.f32.mrf.mxu0
      %v1717 = vadd.f32 0.0, %v1716
      %v1718 = vand.u32 %v359, 4294901760
      %v1719 = vsub.f32 %v359, %v1718
      %v1720 = vand.u32 %v1719, 4294901760
      %v1721 = vsub.f32 %v1719, %v1720
      %v1722 = vand.u32 %v1721, 4294901760
      %1723 = vmatmul.f32.gmra.mxu0 %v1722
      %v1724 = vpop.f32.mrf.mxu0
      %v1725 = vadd.f32 0.0, %v1724
      %v1726 = vand.u32 %v362, 4294901760
      %v1727 = vsub.f32 %v362, %v1726
      %v1728 = vand.u32 %v1727, 4294901760
      %v1729 = vsub.f32 %v1727, %v1728
      %v1730 = vand.u32 %v1729, 4294901760
      %1731 = vmatmul.f32.gmra.mxu0 %v1730
      %v1732 = vpop.f32.mrf.mxu0
      %v1733 = vadd.f32 0.0, %v1732
      %v1734 = vand.u32 %v365, 4294901760
      %v1735 = vsub.f32 %v365, %v1734
      %v1736 = vand.u32 %v1735, 4294901760
      %v1737 = vsub.f32 %v1735, %v1736
      %v1738 = vand.u32 %v1737, 4294901760
      %1739 = vmatmul.f32.gmra.mxu0 %v1738
      %v1740 = vpop.f32.mrf.mxu0
      %v1741 = vadd.f32 0.0, %v1740
      %v1742 = vand.u32 %v368, 4294901760
      %v1743 = vsub.f32 %v368, %v1742
      %v1744 = vand.u32 %v1743, 4294901760
      %v1745 = vsub.f32 %v1743, %v1744
      %v1746 = vand.u32 %v1745, 4294901760
      %1747 = vmatmul.f32.gmra.mxu0 %v1746
      %v1748 = vpop.f32.mrf.mxu0
      %v1749 = vadd.f32 0.0, %v1748
      %v1750 = vand.u32 %v371, 4294901760
      %v1751 = vsub.f32 %v371, %v1750
      %v1752 = vand.u32 %v1751, 4294901760
      %v1753 = vsub.f32 %v1751, %v1752
      %v1754 = vand.u32 %v1753, 4294901760
      %1755 = vmatmul.f32.gmra.mxu0 %v1754
      %v1756 = vpop.f32.mrf.mxu0
      %v1757 = vadd.f32 0.0, %v1756
      %1758 = vdwg.mxu0
      %1759 = vmatpush.msra.mxu0 0.0
      %1760 = vmatpush.msra.mxu0 0.0
      %1761 = vmatpush.msra.mxu0 0.0
      %1762 = vmatpush.msra.mxu0 0.0
      %1763 = vmatpush.msra.mxu0 0.0
      %1764 = vmatpush.msra.mxu0 0.0
      %1765 = vmatpush.msra.mxu0 0.0
      %1766 = vmatpush.msra.mxu0 0.0
      %1767 = vmatpush.msra.mxu0 0.0
      %1768 = vmatpush.msra.mxu0 0.0
      %1769 = vmatpush.msra.mxu0 0.0
      %1770 = vmatpush.msra.mxu0 0.0
      %1771 = vmatpush.msra.mxu0 0.0
      %1772 = vmatpush.msra.mxu0 0.0
      %1773 = vmatpush.msra.mxu0 0.0
      %v1774 = vand.u32 %v376, 4294901760
      %v1775 = vsub.f32 %v376, %v1774
      %v1776 = vand.u32 %v1775, 4294901760
      %v1777 = vsub.f32 %v1775, %v1776
      %v1778 = vand.u32 %v1777, 4294901760
      %1779 = vmatpush.msra.mxu0 %v1778
      %v1780 = vand.u32 %v278, 4294901760
      %1781 = vmatmul.f32.gmra.mxu0 %v1780
      %v1782 = vpop.f32.mrf.mxu0
      %v1783 = vadd.f32 %v1509, %v1782
      %v1784 = vand.u32 %v281, 4294901760
      %1785 = vmatmul.f32.gmra.mxu0 %v1784
      %v1786 = vpop.f32.mrf.mxu0
      %v1787 = vadd.f32 %v1517, %v1786
      %v1788 = vand.u32 %v284, 4294901760
      %1789 = vmatmul.f32.gmra.mxu0 %v1788
      %v1790 = vpop.f32.mrf.mxu0
      %v1791 = vadd.f32 %v1525, %v1790
      %v1792 = vand.u32 %v287, 4294901760
      %1793 = vmatmul.f32.gmra.mxu0 %v1792
      %v1794 = vpop.f32.mrf.mxu0
      %v1795 = vadd.f32 %v1533, %v1794
      %v1796 = vand.u32 %v290, 4294901760
      %1797 = vmatmul.f32.gmra.mxu0 %v1796
      %v1798 = vpop.f32.mrf.mxu0
      %v1799 = vadd.f32 %v1541, %v1798
      %v1800 = vand.u32 %v293, 4294901760
      %1801 = vmatmul.f32.gmra.mxu0 %v1800
      %v1802 = vpop.f32.mrf.mxu0
      %v1803 = vadd.f32 %v1549, %v1802
      %v1804 = vand.u32 %v296, 4294901760
      %1805 = vmatmul.f32.gmra.mxu0 %v1804
      %v1806 = vpop.f32.mrf.mxu0
      %v1807 = vadd.f32 %v1557, %v1806
      %v1808 = vand.u32 %v299, 4294901760
      %1809 = vmatmul.f32.gmra.mxu0 %v1808
      %v1810 = vpop.f32.mrf.mxu0
      %v1811 = vadd.f32 %v1565, %v1810
      %v1812 = vand.u32 %v302, 4294901760
      %1813 = vmatmul.f32.gmra.mxu0 %v1812
      %v1814 = vpop.f32.mrf.mxu0
      %v1815 = vadd.f32 %v1573, %v1814
      %v1816 = vand.u32 %v305, 4294901760
      %1817 = vmatmul.f32.gmra.mxu0 %v1816
      %v1818 = vpop.f32.mrf.mxu0
      %v1819 = vadd.f32 %v1581, %v1818
      %v1820 = vand.u32 %v308, 4294901760
      %1821 = vmatmul.f32.gmra.mxu0 %v1820
      %v1822 = vpop.f32.mrf.mxu0
      %v1823 = vadd.f32 %v1589, %v1822
      %v1824 = vand.u32 %v311, 4294901760
      %1825 = vmatmul.f32.gmra.mxu0 %v1824
      %v1826 = vpop.f32.mrf.mxu0
      %v1827 = vadd.f32 %v1597, %v1826
      %v1828 = vand.u32 %v314, 4294901760
      %1829 = vmatmul.f32.gmra.mxu0 %v1828
      %v1830 = vpop.f32.mrf.mxu0
      %v1831 = vadd.f32 %v1605, %v1830
      %v1832 = vand.u32 %v317, 4294901760
      %1833 = vmatmul.f32.gmra.mxu0 %v1832
      %v1834 = vpop.f32.mrf.mxu0
      %v1835 = vadd.f32 %v1613, %v1834
      %v1836 = vand.u32 %v320, 4294901760
      %1837 = vmatmul.f32.gmra.mxu0 %v1836
      %v1838 = vpop.f32.mrf.mxu0
      %v1839 = vadd.f32 %v1621, %v1838
      %v1840 = vand.u32 %v323, 4294901760
      %1841 = vmatmul.f32.gmra.mxu0 %v1840
      %v1842 = vpop.f32.mrf.mxu0
      %v1843 = vadd.f32 %v1629, %v1842
      %v1844 = vand.u32 %v326, 4294901760
      %1845 = vmatmul.f32.gmra.mxu0 %v1844
      %v1846 = vpop.f32.mrf.mxu0
      %v1847 = vadd.f32 %v1637, %v1846
      %v1848 = vand.u32 %v329, 4294901760
      %1849 = vmatmul.f32.gmra.mxu0 %v1848
      %v1850 = vpop.f32.mrf.mxu0
      %v1851 = vadd.f32 %v1645, %v1850
      %v1852 = vand.u32 %v332, 4294901760
      %1853 = vmatmul.f32.gmra.mxu0 %v1852
      %v1854 = vpop.f32.mrf.mxu0
      %v1855 = vadd.f32 %v1653, %v1854
      %v1856 = vand.u32 %v335, 4294901760
      %1857 = vmatmul.f32.gmra.mxu0 %v1856
      %v1858 = vpop.f32.mrf.mxu0
      %v1859 = vadd.f32 %v1661, %v1858
      %v1860 = vand.u32 %v338, 4294901760
      %1861 = vmatmul.f32.gmra.mxu0 %v1860
      %v1862 = vpop.f32.mrf.mxu0
      %v1863 = vadd.f32 %v1669, %v1862
      %v1864 = vand.u32 %v341, 4294901760
      %1865 = vmatmul.f32.gmra.mxu0 %v1864
      %v1866 = vpop.f32.mrf.mxu0
      %v1867 = vadd.f32 %v1677, %v1866
      %v1868 = vand.u32 %v344, 4294901760
      %1869 = vmatmul.f32.gmra.mxu0 %v1868
      %v1870 = vpop.f32.mrf.mxu0
      %v1871 = vadd.f32 %v1685, %v1870
      %v1872 = vand.u32 %v347, 4294901760
      %1873 = vmatmul.f32.gmra.mxu0 %v1872
      %v1874 = vpop.f32.mrf.mxu0
      %v1875 = vadd.f32 %v1693, %v1874
      %v1876 = vand.u32 %v350, 4294901760
      %1877 = vmatmul.f32.gmra.mxu0 %v1876
      %v1878 = vpop.f32.mrf.mxu0
      %v1879 = vadd.f32 %v1701, %v1878
      %v1880 = vand.u32 %v353, 4294901760
      %1881 = vmatmul.f32.gmra.mxu0 %v1880
      %v1882 = vpop.f32.mrf.mxu0
      %v1883 = vadd.f32 %v1709, %v1882
      %v1884 = vand.u32 %v356, 4294901760
      %1885 = vmatmul.f32.gmra.mxu0 %v1884
      %v1886 = vpop.f32.mrf.mxu0
      %v1887 = vadd.f32 %v1717, %v1886
      %v1888 = vand.u32 %v359, 4294901760
      %1889 = vmatmul.f32.gmra.mxu0 %v1888
      %v1890 = vpop.f32.mrf.mxu0
      %v1891 = vadd.f32 %v1725, %v1890
      %v1892 = vand.u32 %v362, 4294901760
      %1893 = vmatmul.f32.gmra.mxu0 %v1892
      %v1894 = vpop.f32.mrf.mxu0
      %v1895 = vadd.f32 %v1733, %v1894
      %v1896 = vand.u32 %v365, 4294901760
      %1897 = vmatmul.f32.gmra.mxu0 %v1896
      %v1898 = vpop.f32.mrf.mxu0
      %v1899 = vadd.f32 %v1741, %v1898
      %v1900 = vand.u32 %v368, 4294901760
      %1901 = vmatmul.f32.gmra.mxu0 %v1900
      %v1902 = vpop.f32.mrf.mxu0
      %v1903 = vadd.f32 %v1749, %v1902
      %v1904 = vand.u32 %v371, 4294901760
      %1905 = vmatmul.f32.gmra.mxu0 %v1904
      %v1906 = vpop.f32.mrf.mxu0
      %v1907 = vadd.f32 %v1757, %v1906
      %1908 = vdwg.mxu0
      %1909 = vmatpush.msra.mxu0 0.0
      %1910 = vmatpush.msra.mxu0 0.0
      %1911 = vmatpush.msra.mxu0 0.0
      %1912 = vmatpush.msra.mxu0 0.0
      %1913 = vmatpush.msra.mxu0 0.0
      %1914 = vmatpush.msra.mxu0 0.0
      %1915 = vmatpush.msra.mxu0 0.0
      %1916 = vmatpush.msra.mxu0 0.0
      %1917 = vmatpush.msra.mxu0 0.0
      %1918 = vmatpush.msra.mxu0 0.0
      %1919 = vmatpush.msra.mxu0 0.0
      %1920 = vmatpush.msra.mxu0 0.0
      %1921 = vmatpush.msra.mxu0 0.0
      %1922 = vmatpush.msra.mxu0 0.0
      %1923 = vmatpush.msra.mxu0 0.0
      %v1924 = vand.u32 %v376, 4294901760
      %v1925 = vsub.f32 %v376, %v1924
      %1926 = vmatpush.msra.mxu0 %v1925
      %v1927 = vand.u32 %v278, 4294901760
      %v1928 = vsub.f32 %v278, %v1927
      %1929 = vmatmul.f32.gmra.mxu0 %v1928
      %v1930 = vpop.f32.mrf.mxu0
      %v1931 = vadd.f32 %v1783, %v1930
      %v1932 = vand.u32 %v281, 4294901760
      %v1933 = vsub.f32 %v281, %v1932
      %1934 = vmatmul.f32.gmra.mxu0 %v1933
      %v1935 = vpop.f32.mrf.mxu0
      %v1936 = vadd.f32 %v1787, %v1935
      %v1937 = vand.u32 %v284, 4294901760
      %v1938 = vsub.f32 %v284, %v1937
      %1939 = vmatmul.f32.gmra.mxu0 %v1938
      %v1940 = vpop.f32.mrf.mxu0
      %v1941 = vadd.f32 %v1791, %v1940
      %v1942 = vand.u32 %v287, 4294901760
      %v1943 = vsub.f32 %v287, %v1942
      %1944 = vmatmul.f32.gmra.mxu0 %v1943
      %v1945 = vpop.f32.mrf.mxu0
      %v1946 = vadd.f32 %v1795, %v1945
      %v1947 = vand.u32 %v290, 4294901760
      %v1948 = vsub.f32 %v290, %v1947
      %1949 = vmatmul.f32.gmra.mxu0 %v1948
      %v1950 = vpop.f32.mrf.mxu0
      %v1951 = vadd.f32 %v1799, %v1950
      %v1952 = vand.u32 %v293, 4294901760
      %v1953 = vsub.f32 %v293, %v1952
      %1954 = vmatmul.f32.gmra.mxu0 %v1953
      %v1955 = vpop.f32.mrf.mxu0
      %v1956 = vadd.f32 %v1803, %v1955
      %v1957 = vand.u32 %v296, 4294901760
      %v1958 = vsub.f32 %v296, %v1957
      %1959 = vmatmul.f32.gmra.mxu0 %v1958
      %v1960 = vpop.f32.mrf.mxu0
      %v1961 = vadd.f32 %v1807, %v1960
      %v1962 = vand.u32 %v299, 4294901760
      %v1963 = vsub.f32 %v299, %v1962
      %1964 = vmatmul.f32.gmra.mxu0 %v1963
      %v1965 = vpop.f32.mrf.mxu0
      %v1966 = vadd.f32 %v1811, %v1965
      %v1967 = vand.u32 %v302, 4294901760
      %v1968 = vsub.f32 %v302, %v1967
      %1969 = vmatmul.f32.gmra.mxu0 %v1968
      %v1970 = vpop.f32.mrf.mxu0
      %v1971 = vadd.f32 %v1815, %v1970
      %v1972 = vand.u32 %v305, 4294901760
      %v1973 = vsub.f32 %v305, %v1972
      %1974 = vmatmul.f32.gmra.mxu0 %v1973
      %v1975 = vpop.f32.mrf.mxu0
      %v1976 = vadd.f32 %v1819, %v1975
      %v1977 = vand.u32 %v308, 4294901760
      %v1978 = vsub.f32 %v308, %v1977
      %1979 = vmatmul.f32.gmra.mxu0 %v1978
      %v1980 = vpop.f32.mrf.mxu0
      %v1981 = vadd.f32 %v1823, %v1980
      %v1982 = vand.u32 %v311, 4294901760
      %v1983 = vsub.f32 %v311, %v1982
      %1984 = vmatmul.f32.gmra.mxu0 %v1983
      %v1985 = vpop.f32.mrf.mxu0
      %v1986 = vadd.f32 %v1827, %v1985
      %v1987 = vand.u32 %v314, 4294901760
      %v1988 = vsub.f32 %v314, %v1987
      %1989 = vmatmul.f32.gmra.mxu0 %v1988
      %v1990 = vpop.f32.mrf.mxu0
      %v1991 = vadd.f32 %v1831, %v1990
      %v1992 = vand.u32 %v317, 4294901760
      %v1993 = vsub.f32 %v317, %v1992
      %1994 = vmatmul.f32.gmra.mxu0 %v1993
      %v1995 = vpop.f32.mrf.mxu0
      %v1996 = vadd.f32 %v1835, %v1995
      %v1997 = vand.u32 %v320, 4294901760
      %v1998 = vsub.f32 %v320, %v1997
      %1999 = vmatmul.f32.gmra.mxu0 %v1998
      %v2000 = vpop.f32.mrf.mxu0
      %v2001 = vadd.f32 %v1839, %v2000
      %v2002 = vand.u32 %v323, 4294901760
      %v2003 = vsub.f32 %v323, %v2002
      %2004 = vmatmul.f32.gmra.mxu0 %v2003
      %v2005 = vpop.f32.mrf.mxu0
      %v2006 = vadd.f32 %v1843, %v2005
      %v2007 = vand.u32 %v326, 4294901760
      %v2008 = vsub.f32 %v326, %v2007
      %2009 = vmatmul.f32.gmra.mxu0 %v2008
      %v2010 = vpop.f32.mrf.mxu0
      %v2011 = vadd.f32 %v1847, %v2010
      %v2012 = vand.u32 %v329, 4294901760
      %v2013 = vsub.f32 %v329, %v2012
      %2014 = vmatmul.f32.gmra.mxu0 %v2013
      %v2015 = vpop.f32.mrf.mxu0
      %v2016 = vadd.f32 %v1851, %v2015
      %v2017 = vand.u32 %v332, 4294901760
      %v2018 = vsub.f32 %v332, %v2017
      %2019 = vmatmul.f32.gmra.mxu0 %v2018
      %v2020 = vpop.f32.mrf.mxu0
      %v2021 = vadd.f32 %v1855, %v2020
      %v2022 = vand.u32 %v335, 4294901760
      %v2023 = vsub.f32 %v335, %v2022
      %2024 = vmatmul.f32.gmra.mxu0 %v2023
      %v2025 = vpop.f32.mrf.mxu0
      %v2026 = vadd.f32 %v1859, %v2025
      %v2027 = vand.u32 %v338, 4294901760
      %v2028 = vsub.f32 %v338, %v2027
      %2029 = vmatmul.f32.gmra.mxu0 %v2028
      %v2030 = vpop.f32.mrf.mxu0
      %v2031 = vadd.f32 %v1863, %v2030
      %v2032 = vand.u32 %v341, 4294901760
      %v2033 = vsub.f32 %v341, %v2032
      %2034 = vmatmul.f32.gmra.mxu0 %v2033
      %v2035 = vpop.f32.mrf.mxu0
      %v2036 = vadd.f32 %v1867, %v2035
      %v2037 = vand.u32 %v344, 4294901760
      %v2038 = vsub.f32 %v344, %v2037
      %2039 = vmatmul.f32.gmra.mxu0 %v2038
      %v2040 = vpop.f32.mrf.mxu0
      %v2041 = vadd.f32 %v1871, %v2040
      %v2042 = vand.u32 %v347, 4294901760
      %v2043 = vsub.f32 %v347, %v2042
      %2044 = vmatmul.f32.gmra.mxu0 %v2043
      %v2045 = vpop.f32.mrf.mxu0
      %v2046 = vadd.f32 %v1875, %v2045
      %v2047 = vand.u32 %v350, 4294901760
      %v2048 = vsub.f32 %v350, %v2047
      %2049 = vmatmul.f32.gmra.mxu0 %v2048
      %v2050 = vpop.f32.mrf.mxu0
      %v2051 = vadd.f32 %v1879, %v2050
      %v2052 = vand.u32 %v353, 4294901760
      %v2053 = vsub.f32 %v353, %v2052
      %2054 = vmatmul.f32.gmra.mxu0 %v2053
      %v2055 = vpop.f32.mrf.mxu0
      %v2056 = vadd.f32 %v1883, %v2055
      %v2057 = vand.u32 %v356, 4294901760
      %v2058 = vsub.f32 %v356, %v2057
      %2059 = vmatmul.f32.gmra.mxu0 %v2058
      %v2060 = vpop.f32.mrf.mxu0
      %v2061 = vadd.f32 %v1887, %v2060
      %v2062 = vand.u32 %v359, 4294901760
      %v2063 = vsub.f32 %v359, %v2062
      %2064 = vmatmul.f32.gmra.mxu0 %v2063
      %v2065 = vpop.f32.mrf.mxu0
      %v2066 = vadd.f32 %v1891, %v2065
      %v2067 = vand.u32 %v362, 4294901760
      %v2068 = vsub.f32 %v362, %v2067
      %2069 = vmatmul.f32.gmra.mxu0 %v2068
      %v2070 = vpop.f32.mrf.mxu0
      %v2071 = vadd.f32 %v1895, %v2070
      %v2072 = vand.u32 %v365, 4294901760
      %v2073 = vsub.f32 %v365, %v2072
      %2074 = vmatmul.f32.gmra.mxu0 %v2073
      %v2075 = vpop.f32.mrf.mxu0
      %v2076 = vadd.f32 %v1899, %v2075
      %v2077 = vand.u32 %v368, 4294901760
      %v2078 = vsub.f32 %v368, %v2077
      %2079 = vmatmul.f32.gmra.mxu0 %v2078
      %v2080 = vpop.f32.mrf.mxu0
      %v2081 = vadd.f32 %v1903, %v2080
      %v2082 = vand.u32 %v371, 4294901760
      %v2083 = vsub.f32 %v371, %v2082
      %2084 = vmatmul.f32.gmra.mxu0 %v2083
      %v2085 = vpop.f32.mrf.mxu0
      %v2086 = vadd.f32 %v1907, %v2085
      %2087 = vdwg.mxu0
      %2088 = vmatpush.msra.mxu0 0.0
      %2089 = vmatpush.msra.mxu0 0.0
      %2090 = vmatpush.msra.mxu0 0.0
      %2091 = vmatpush.msra.mxu0 0.0
      %2092 = vmatpush.msra.mxu0 0.0
      %2093 = vmatpush.msra.mxu0 0.0
      %2094 = vmatpush.msra.mxu0 0.0
      %2095 = vmatpush.msra.mxu0 0.0
      %2096 = vmatpush.msra.mxu0 0.0
      %2097 = vmatpush.msra.mxu0 0.0
      %2098 = vmatpush.msra.mxu0 0.0
      %2099 = vmatpush.msra.mxu0 0.0
      %2100 = vmatpush.msra.mxu0 0.0
      %2101 = vmatpush.msra.mxu0 0.0
      %2102 = vmatpush.msra.mxu0 0.0
      %v2103 = vand.u32 %v376, 4294901760
      %2104 = vmatpush.msra.mxu0 %v2103
      %v2105 = vand.u32 %v278, 4294901760
      %v2106 = vsub.f32 %v278, %v2105
      %v2107 = vand.u32 %v2106, 4294901760
      %2108 = vmatmul.f32.gmra.mxu0 %v2107
      %v2109 = vpop.f32.mrf.mxu0
      %v2110 = vadd.f32 %v1931, %v2109
      %v2111 = vand.u32 %v281, 4294901760
      %v2112 = vsub.f32 %v281, %v2111
      %v2113 = vand.u32 %v2112, 4294901760
      %2114 = vmatmul.f32.gmra.mxu0 %v2113
      %v2115 = vpop.f32.mrf.mxu0
      %v2116 = vadd.f32 %v1936, %v2115
      %v2117 = vand.u32 %v284, 4294901760
      %v2118 = vsub.f32 %v284, %v2117
      %v2119 = vand.u32 %v2118, 4294901760
      %2120 = vmatmul.f32.gmra.mxu0 %v2119
      %v2121 = vpop.f32.mrf.mxu0
      %v2122 = vadd.f32 %v1941, %v2121
      %v2123 = vand.u32 %v287, 4294901760
      %v2124 = vsub.f32 %v287, %v2123
      %v2125 = vand.u32 %v2124, 4294901760
      %2126 = vmatmul.f32.gmra.mxu0 %v2125
      %v2127 = vpop.f32.mrf.mxu0
      %v2128 = vadd.f32 %v1946, %v2127
      %v2129 = vand.u32 %v290, 4294901760
      %v2130 = vsub.f32 %v290, %v2129
      %v2131 = vand.u32 %v2130, 4294901760
      %2132 = vmatmul.f32.gmra.mxu0 %v2131
      %v2133 = vpop.f32.mrf.mxu0
      %v2134 = vadd.f32 %v1951, %v2133
      %v2135 = vand.u32 %v293, 4294901760
      %v2136 = vsub.f32 %v293, %v2135
      %v2137 = vand.u32 %v2136, 4294901760
      %2138 = vmatmul.f32.gmra.mxu0 %v2137
      %v2139 = vpop.f32.mrf.mxu0
      %v2140 = vadd.f32 %v1956, %v2139
      %v2141 = vand.u32 %v296, 4294901760
      %v2142 = vsub.f32 %v296, %v2141
      %v2143 = vand.u32 %v2142, 4294901760
      %2144 = vmatmul.f32.gmra.mxu0 %v2143
      %v2145 = vpop.f32.mrf.mxu0
      %v2146 = vadd.f32 %v1961, %v2145
      %v2147 = vand.u32 %v299, 4294901760
      %v2148 = vsub.f32 %v299, %v2147
      %v2149 = vand.u32 %v2148, 4294901760
      %2150 = vmatmul.f32.gmra.mxu0 %v2149
      %v2151 = vpop.f32.mrf.mxu0
      %v2152 = vadd.f32 %v1966, %v2151
      %v2153 = vand.u32 %v302, 4294901760
      %v2154 = vsub.f32 %v302, %v2153
      %v2155 = vand.u32 %v2154, 4294901760
      %2156 = vmatmul.f32.gmra.mxu0 %v2155
      %v2157 = vpop.f32.mrf.mxu0
      %v2158 = vadd.f32 %v1971, %v2157
      %v2159 = vand.u32 %v305, 4294901760
      %v2160 = vsub.f32 %v305, %v2159
      %v2161 = vand.u32 %v2160, 4294901760
      %2162 = vmatmul.f32.gmra.mxu0 %v2161
      %v2163 = vpop.f32.mrf.mxu0
      %v2164 = vadd.f32 %v1976, %v2163
      %v2165 = vand.u32 %v308, 4294901760
      %v2166 = vsub.f32 %v308, %v2165
      %v2167 = vand.u32 %v2166, 4294901760
      %2168 = vmatmul.f32.gmra.mxu0 %v2167
      %v2169 = vpop.f32.mrf.mxu0
      %v2170 = vadd.f32 %v1981, %v2169
      %v2171 = vand.u32 %v311, 4294901760
      %v2172 = vsub.f32 %v311, %v2171
      %v2173 = vand.u32 %v2172, 4294901760
      %2174 = vmatmul.f32.gmra.mxu0 %v2173
      %v2175 = vpop.f32.mrf.mxu0
      %v2176 = vadd.f32 %v1986, %v2175
      %v2177 = vand.u32 %v314, 4294901760
      %v2178 = vsub.f32 %v314, %v2177
      %v2179 = vand.u32 %v2178, 4294901760
      %2180 = vmatmul.f32.gmra.mxu0 %v2179
      %v2181 = vpop.f32.mrf.mxu0
      %v2182 = vadd.f32 %v1991, %v2181
      %v2183 = vand.u32 %v317, 4294901760
      %v2184 = vsub.f32 %v317, %v2183
      %v2185 = vand.u32 %v2184, 4294901760
      %2186 = vmatmul.f32.gmra.mxu0 %v2185
      %v2187 = vpop.f32.mrf.mxu0
      %v2188 = vadd.f32 %v1996, %v2187
      %v2189 = vand.u32 %v320, 4294901760
      %v2190 = vsub.f32 %v320, %v2189
      %v2191 = vand.u32 %v2190, 4294901760
      %2192 = vmatmul.f32.gmra.mxu0 %v2191
      %v2193 = vpop.f32.mrf.mxu0
      %v2194 = vadd.f32 %v2001, %v2193
      %v2195 = vand.u32 %v323, 4294901760
      %v2196 = vsub.f32 %v323, %v2195
      %v2197 = vand.u32 %v2196, 4294901760
      %2198 = vmatmul.f32.gmra.mxu0 %v2197
      %v2199 = vpop.f32.mrf.mxu0
      %v2200 = vadd.f32 %v2006, %v2199
      %v2201 = vand.u32 %v326, 4294901760
      %v2202 = vsub.f32 %v326, %v2201
      %v2203 = vand.u32 %v2202, 4294901760
      %2204 = vmatmul.f32.gmra.mxu0 %v2203
      %v2205 = vpop.f32.mrf.mxu0
      %v2206 = vadd.f32 %v2011, %v2205
      %v2207 = vand.u32 %v329, 4294901760
      %v2208 = vsub.f32 %v329, %v2207
      %v2209 = vand.u32 %v2208, 4294901760
      %2210 = vmatmul.f32.gmra.mxu0 %v2209
      %v2211 = vpop.f32.mrf.mxu0
      %v2212 = vadd.f32 %v2016, %v2211
      %v2213 = vand.u32 %v332, 4294901760
      %v2214 = vsub.f32 %v332, %v2213
      %v2215 = vand.u32 %v2214, 4294901760
      %2216 = vmatmul.f32.gmra.mxu0 %v2215
      %v2217 = vpop.f32.mrf.mxu0
      %v2218 = vadd.f32 %v2021, %v2217
      %v2219 = vand.u32 %v335, 4294901760
      %v2220 = vsub.f32 %v335, %v2219
      %v2221 = vand.u32 %v2220, 4294901760
      %2222 = vmatmul.f32.gmra.mxu0 %v2221
      %v2223 = vpop.f32.mrf.mxu0
      %v2224 = vadd.f32 %v2026, %v2223
      %v2225 = vand.u32 %v338, 4294901760
      %v2226 = vsub.f32 %v338, %v2225
      %v2227 = vand.u32 %v2226, 4294901760
      %2228 = vmatmul.f32.gmra.mxu0 %v2227
      %v2229 = vpop.f32.mrf.mxu0
      %v2230 = vadd.f32 %v2031, %v2229
      %v2231 = vand.u32 %v341, 4294901760
      %v2232 = vsub.f32 %v341, %v2231
      %v2233 = vand.u32 %v2232, 4294901760
      %2234 = vmatmul.f32.gmra.mxu0 %v2233
      %v2235 = vpop.f32.mrf.mxu0
      %v2236 = vadd.f32 %v2036, %v2235
      %v2237 = vand.u32 %v344, 4294901760
      %v2238 = vsub.f32 %v344, %v2237
      %v2239 = vand.u32 %v2238, 4294901760
      %2240 = vmatmul.f32.gmra.mxu0 %v2239
      %v2241 = vpop.f32.mrf.mxu0
      %v2242 = vadd.f32 %v2041, %v2241
      %v2243 = vand.u32 %v347, 4294901760
      %v2244 = vsub.f32 %v347, %v2243
      %v2245 = vand.u32 %v2244, 4294901760
      %2246 = vmatmul.f32.gmra.mxu0 %v2245
      %v2247 = vpop.f32.mrf.mxu0
      %v2248 = vadd.f32 %v2046, %v2247
      %v2249 = vand.u32 %v350, 4294901760
      %v2250 = vsub.f32 %v350, %v2249
      %v2251 = vand.u32 %v2250, 4294901760
      %2252 = vmatmul.f32.gmra.mxu0 %v2251
      %v2253 = vpop.f32.mrf.mxu0
      %v2254 = vadd.f32 %v2051, %v2253
      %v2255 = vand.u32 %v353, 4294901760
      %v2256 = vsub.f32 %v353, %v2255
      %v2257 = vand.u32 %v2256, 4294901760
      %2258 = vmatmul.f32.gmra.mxu0 %v2257
      %v2259 = vpop.f32.mrf.mxu0
      %v2260 = vadd.f32 %v2056, %v2259
      %v2261 = vand.u32 %v356, 4294901760
      %v2262 = vsub.f32 %v356, %v2261
      %v2263 = vand.u32 %v2262, 4294901760
      %2264 = vmatmul.f32.gmra.mxu0 %v2263
      %v2265 = vpop.f32.mrf.mxu0
      %v2266 = vadd.f32 %v2061, %v2265
      %v2267 = vand.u32 %v359, 4294901760
      %v2268 = vsub.f32 %v359, %v2267
      %v2269 = vand.u32 %v2268, 4294901760
      %2270 = vmatmul.f32.gmra.mxu0 %v2269
      %v2271 = vpop.f32.mrf.mxu0
      %v2272 = vadd.f32 %v2066, %v2271
      %v2273 = vand.u32 %v362, 4294901760
      %v2274 = vsub.f32 %v362, %v2273
      %v2275 = vand.u32 %v2274, 4294901760
      %2276 = vmatmul.f32.gmra.mxu0 %v2275
      %v2277 = vpop.f32.mrf.mxu0
      %v2278 = vadd.f32 %v2071, %v2277
      %v2279 = vand.u32 %v365, 4294901760
      %v2280 = vsub.f32 %v365, %v2279
      %v2281 = vand.u32 %v2280, 4294901760
      %2282 = vmatmul.f32.gmra.mxu0 %v2281
      %v2283 = vpop.f32.mrf.mxu0
      %v2284 = vadd.f32 %v2076, %v2283
      %v2285 = vand.u32 %v368, 4294901760
      %v2286 = vsub.f32 %v368, %v2285
      %v2287 = vand.u32 %v2286, 4294901760
      %2288 = vmatmul.f32.gmra.mxu0 %v2287
      %v2289 = vpop.f32.mrf.mxu0
      %v2290 = vadd.f32 %v2081, %v2289
      %v2291 = vand.u32 %v371, 4294901760
      %v2292 = vsub.f32 %v371, %v2291
      %v2293 = vand.u32 %v2292, 4294901760
      %2294 = vmatmul.f32.gmra.mxu0 %v2293
      %v2295 = vpop.f32.mrf.mxu0
      %v2296 = vadd.f32 %v2086, %v2295
      %2297 = vdwg.mxu0
      %2298 = vmatpush.msra.mxu0 0.0
      %2299 = vmatpush.msra.mxu0 0.0
      %2300 = vmatpush.msra.mxu0 0.0
      %2301 = vmatpush.msra.mxu0 0.0
      %2302 = vmatpush.msra.mxu0 0.0
      %2303 = vmatpush.msra.mxu0 0.0
      %2304 = vmatpush.msra.mxu0 0.0
      %2305 = vmatpush.msra.mxu0 0.0
      %2306 = vmatpush.msra.mxu0 0.0
      %2307 = vmatpush.msra.mxu0 0.0
      %2308 = vmatpush.msra.mxu0 0.0
      %2309 = vmatpush.msra.mxu0 0.0
      %2310 = vmatpush.msra.mxu0 0.0
      %2311 = vmatpush.msra.mxu0 0.0
      %2312 = vmatpush.msra.mxu0 0.0
      %v2313 = vand.u32 %v376, 4294901760
      %v2314 = vsub.f32 %v376, %v2313
      %v2315 = vand.u32 %v2314, 4294901760
      %2316 = vmatpush.msra.mxu0 %v2315
      %v2317 = vand.u32 %v278, 4294901760
      %2318 = vmatmul.f32.gmra.mxu0 %v2317
      %v2319 = vpop.f32.mrf.mxu0
      %v2320 = vadd.f32 %v2110, %v2319
      %v2321 = vand.u32 %v281, 4294901760
      %2322 = vmatmul.f32.gmra.mxu0 %v2321
      %v2323 = vpop.f32.mrf.mxu0
      %v2324 = vadd.f32 %v2116, %v2323
      %v2325 = vand.u32 %v284, 4294901760
      %2326 = vmatmul.f32.gmra.mxu0 %v2325
      %v2327 = vpop.f32.mrf.mxu0
      %v2328 = vadd.f32 %v2122, %v2327
      %v2329 = vand.u32 %v287, 4294901760
      %2330 = vmatmul.f32.gmra.mxu0 %v2329
      %v2331 = vpop.f32.mrf.mxu0
      %v2332 = vadd.f32 %v2128, %v2331
      %v2333 = vand.u32 %v290, 4294901760
      %2334 = vmatmul.f32.gmra.mxu0 %v2333
      %v2335 = vpop.f32.mrf.mxu0
      %v2336 = vadd.f32 %v2134, %v2335
      %v2337 = vand.u32 %v293, 4294901760
      %2338 = vmatmul.f32.gmra.mxu0 %v2337
      %v2339 = vpop.f32.mrf.mxu0
      %v2340 = vadd.f32 %v2140, %v2339
      %v2341 = vand.u32 %v296, 4294901760
      %2342 = vmatmul.f32.gmra.mxu0 %v2341
      %v2343 = vpop.f32.mrf.mxu0
      %v2344 = vadd.f32 %v2146, %v2343
      %v2345 = vand.u32 %v299, 4294901760
      %2346 = vmatmul.f32.gmra.mxu0 %v2345
      %v2347 = vpop.f32.mrf.mxu0
      %v2348 = vadd.f32 %v2152, %v2347
      %v2349 = vand.u32 %v302, 4294901760
      %2350 = vmatmul.f32.gmra.mxu0 %v2349
      %v2351 = vpop.f32.mrf.mxu0
      %v2352 = vadd.f32 %v2158, %v2351
      %v2353 = vand.u32 %v305, 4294901760
      %2354 = vmatmul.f32.gmra.mxu0 %v2353
      %v2355 = vpop.f32.mrf.mxu0
      %v2356 = vadd.f32 %v2164, %v2355
      %v2357 = vand.u32 %v308, 4294901760
      %2358 = vmatmul.f32.gmra.mxu0 %v2357
      %v2359 = vpop.f32.mrf.mxu0
      %v2360 = vadd.f32 %v2170, %v2359
      %v2361 = vand.u32 %v311, 4294901760
      %2362 = vmatmul.f32.gmra.mxu0 %v2361
      %v2363 = vpop.f32.mrf.mxu0
      %v2364 = vadd.f32 %v2176, %v2363
      %v2365 = vand.u32 %v314, 4294901760
      %2366 = vmatmul.f32.gmra.mxu0 %v2365
      %v2367 = vpop.f32.mrf.mxu0
      %v2368 = vadd.f32 %v2182, %v2367
      %v2369 = vand.u32 %v317, 4294901760
      %2370 = vmatmul.f32.gmra.mxu0 %v2369
      %v2371 = vpop.f32.mrf.mxu0
      %v2372 = vadd.f32 %v2188, %v2371
      %v2373 = vand.u32 %v320, 4294901760
      %2374 = vmatmul.f32.gmra.mxu0 %v2373
      %v2375 = vpop.f32.mrf.mxu0
      %v2376 = vadd.f32 %v2194, %v2375
      %v2377 = vand.u32 %v323, 4294901760
      %2378 = vmatmul.f32.gmra.mxu0 %v2377
      %v2379 = vpop.f32.mrf.mxu0
      %v2380 = vadd.f32 %v2200, %v2379
      %v2381 = vand.u32 %v326, 4294901760
      %2382 = vmatmul.f32.gmra.mxu0 %v2381
      %v2383 = vpop.f32.mrf.mxu0
      %v2384 = vadd.f32 %v2206, %v2383
      %v2385 = vand.u32 %v329, 4294901760
      %2386 = vmatmul.f32.gmra.mxu0 %v2385
      %v2387 = vpop.f32.mrf.mxu0
      %v2388 = vadd.f32 %v2212, %v2387
      %v2389 = vand.u32 %v332, 4294901760
      %2390 = vmatmul.f32.gmra.mxu0 %v2389
      %v2391 = vpop.f32.mrf.mxu0
      %v2392 = vadd.f32 %v2218, %v2391
      %v2393 = vand.u32 %v335, 4294901760
      %2394 = vmatmul.f32.gmra.mxu0 %v2393
      %v2395 = vpop.f32.mrf.mxu0
      %v2396 = vadd.f32 %v2224, %v2395
      %v2397 = vand.u32 %v338, 4294901760
      %2398 = vmatmul.f32.gmra.mxu0 %v2397
      %v2399 = vpop.f32.mrf.mxu0
      %v2400 = vadd.f32 %v2230, %v2399
      %v2401 = vand.u32 %v341, 4294901760
      %2402 = vmatmul.f32.gmra.mxu0 %v2401
      %v2403 = vpop.f32.mrf.mxu0
      %v2404 = vadd.f32 %v2236, %v2403
      %v2405 = vand.u32 %v344, 4294901760
      %2406 = vmatmul.f32.gmra.mxu0 %v2405
      %v2407 = vpop.f32.mrf.mxu0
      %v2408 = vadd.f32 %v2242, %v2407
      %v2409 = vand.u32 %v347, 4294901760
      %2410 = vmatmul.f32.gmra.mxu0 %v2409
      %v2411 = vpop.f32.mrf.mxu0
      %v2412 = vadd.f32 %v2248, %v2411
      %v2413 = vand.u32 %v350, 4294901760
      %2414 = vmatmul.f32.gmra.mxu0 %v2413
      %v2415 = vpop.f32.mrf.mxu0
      %v2416 = vadd.f32 %v2254, %v2415
      %v2417 = vand.u32 %v353, 4294901760
      %2418 = vmatmul.f32.gmra.mxu0 %v2417
      %v2419 = vpop.f32.mrf.mxu0
      %v2420 = vadd.f32 %v2260, %v2419
      %v2421 = vand.u32 %v356, 4294901760
      %2422 = vmatmul.f32.gmra.mxu0 %v2421
      %v2423 = vpop.f32.mrf.mxu0
      %v2424 = vadd.f32 %v2266, %v2423
      %v2425 = vand.u32 %v359, 4294901760
      %2426 = vmatmul.f32.gmra.mxu0 %v2425
      %v2427 = vpop.f32.mrf.mxu0
      %v2428 = vadd.f32 %v2272, %v2427
      %v2429 = vand.u32 %v362, 4294901760
      %2430 = vmatmul.f32.gmra.mxu0 %v2429
      %v2431 = vpop.f32.mrf.mxu0
      %v2432 = vadd.f32 %v2278, %v2431
      %v2433 = vand.u32 %v365, 4294901760
      %2434 = vmatmul.f32.gmra.mxu0 %v2433
      %v2435 = vpop.f32.mrf.mxu0
      %v2436 = vadd.f32 %v2284, %v2435
      %v2437 = vand.u32 %v368, 4294901760
      %2438 = vmatmul.f32.gmra.mxu0 %v2437
      %v2439 = vpop.f32.mrf.mxu0
      %v2440 = vadd.f32 %v2290, %v2439
      %v2441 = vand.u32 %v371, 4294901760
      %2442 = vmatmul.f32.gmra.mxu0 %v2441
      %v2443 = vpop.f32.mrf.mxu0
      %v2444 = vadd.f32 %v2296, %v2443
      %2445 = vdwg.mxu0
      %2446 = vmatpush.msra.mxu0 0.0
      %2447 = vmatpush.msra.mxu0 0.0
      %2448 = vmatpush.msra.mxu0 0.0
      %2449 = vmatpush.msra.mxu0 0.0
      %2450 = vmatpush.msra.mxu0 0.0
      %2451 = vmatpush.msra.mxu0 0.0
      %2452 = vmatpush.msra.mxu0 0.0
      %2453 = vmatpush.msra.mxu0 0.0
      %2454 = vmatpush.msra.mxu0 0.0
      %2455 = vmatpush.msra.mxu0 0.0
      %2456 = vmatpush.msra.mxu0 0.0
      %2457 = vmatpush.msra.mxu0 0.0
      %2458 = vmatpush.msra.mxu0 0.0
      %2459 = vmatpush.msra.mxu0 0.0
      %2460 = vmatpush.msra.mxu0 0.0
      %v2461 = vand.u32 %v376, 4294901760
      %2462 = vmatpush.msra.mxu0 %v2461
      %v2463 = vand.u32 %v278, 4294901760
      %2464 = vmatmul.f32.gmra.mxu0 %v2463
      %v2465 = vpop.f32.mrf.mxu0
      %v2466 = vadd.f32 %v2320, %v2465
      %v2467 = vand.u32 %v281, 4294901760
      %2468 = vmatmul.f32.gmra.mxu0 %v2467
      %v2469 = vpop.f32.mrf.mxu0
      %v2470 = vadd.f32 %v2324, %v2469
      %v2471 = vand.u32 %v284, 4294901760
      %2472 = vmatmul.f32.gmra.mxu0 %v2471
      %v2473 = vpop.f32.mrf.mxu0
      %v2474 = vadd.f32 %v2328, %v2473
      %v2475 = vand.u32 %v287, 4294901760
      %2476 = vmatmul.f32.gmra.mxu0 %v2475
      %v2477 = vpop.f32.mrf.mxu0
      %v2478 = vadd.f32 %v2332, %v2477
      %v2479 = vand.u32 %v290, 4294901760
      %2480 = vmatmul.f32.gmra.mxu0 %v2479
      %v2481 = vpop.f32.mrf.mxu0
      %v2482 = vadd.f32 %v2336, %v2481
      %v2483 = vand.u32 %v293, 4294901760
      %2484 = vmatmul.f32.gmra.mxu0 %v2483
      %v2485 = vpop.f32.mrf.mxu0
      %v2486 = vadd.f32 %v2340, %v2485
      %v2487 = vand.u32 %v296, 4294901760
      %2488 = vmatmul.f32.gmra.mxu0 %v2487
      %v2489 = vpop.f32.mrf.mxu0
      %v2490 = vadd.f32 %v2344, %v2489
      %v2491 = vand.u32 %v299, 4294901760
      %2492 = vmatmul.f32.gmra.mxu0 %v2491
      %v2493 = vpop.f32.mrf.mxu0
      %v2494 = vadd.f32 %v2348, %v2493
      %v2495 = vand.u32 %v302, 4294901760
      %2496 = vmatmul.f32.gmra.mxu0 %v2495
      %v2497 = vpop.f32.mrf.mxu0
      %v2498 = vadd.f32 %v2352, %v2497
      %v2499 = vand.u32 %v305, 4294901760
      %2500 = vmatmul.f32.gmra.mxu0 %v2499
      %v2501 = vpop.f32.mrf.mxu0
      %v2502 = vadd.f32 %v2356, %v2501
      %v2503 = vand.u32 %v308, 4294901760
      %2504 = vmatmul.f32.gmra.mxu0 %v2503
      %v2505 = vpop.f32.mrf.mxu0
      %v2506 = vadd.f32 %v2360, %v2505
      %v2507 = vand.u32 %v311, 4294901760
      %2508 = vmatmul.f32.gmra.mxu0 %v2507
      %v2509 = vpop.f32.mrf.mxu0
      %v2510 = vadd.f32 %v2364, %v2509
      %v2511 = vand.u32 %v314, 4294901760
      %2512 = vmatmul.f32.gmra.mxu0 %v2511
      %v2513 = vpop.f32.mrf.mxu0
      %v2514 = vadd.f32 %v2368, %v2513
      %v2515 = vand.u32 %v317, 4294901760
      %2516 = vmatmul.f32.gmra.mxu0 %v2515
      %v2517 = vpop.f32.mrf.mxu0
      %v2518 = vadd.f32 %v2372, %v2517
      %v2519 = vand.u32 %v320, 4294901760
      %2520 = vmatmul.f32.gmra.mxu0 %v2519
      %v2521 = vpop.f32.mrf.mxu0
      %v2522 = vadd.f32 %v2376, %v2521
      %v2523 = vand.u32 %v323, 4294901760
      %2524 = vmatmul.f32.gmra.mxu0 %v2523
      %v2525 = vpop.f32.mrf.mxu0
      %v2526 = vadd.f32 %v2380, %v2525
      %v2527 = vand.u32 %v326, 4294901760
      %2528 = vmatmul.f32.gmra.mxu0 %v2527
      %v2529 = vpop.f32.mrf.mxu0
      %v2530 = vadd.f32 %v2384, %v2529
      %v2531 = vand.u32 %v329, 4294901760
      %2532 = vmatmul.f32.gmra.mxu0 %v2531
      %v2533 = vpop.f32.mrf.mxu0
      %v2534 = vadd.f32 %v2388, %v2533
      %v2535 = vand.u32 %v332, 4294901760
      %2536 = vmatmul.f32.gmra.mxu0 %v2535
      %v2537 = vpop.f32.mrf.mxu0
      %v2538 = vadd.f32 %v2392, %v2537
      %v2539 = vand.u32 %v335, 4294901760
      %2540 = vmatmul.f32.gmra.mxu0 %v2539
      %v2541 = vpop.f32.mrf.mxu0
      %v2542 = vadd.f32 %v2396, %v2541
      %v2543 = vand.u32 %v338, 4294901760
      %2544 = vmatmul.f32.gmra.mxu0 %v2543
      %v2545 = vpop.f32.mrf.mxu0
      %v2546 = vadd.f32 %v2400, %v2545
      %v2547 = vand.u32 %v341, 4294901760
      %2548 = vmatmul.f32.gmra.mxu0 %v2547
      %v2549 = vpop.f32.mrf.mxu0
      %v2550 = vadd.f32 %v2404, %v2549
      %v2551 = vand.u32 %v344, 4294901760
      %2552 = vmatmul.f32.gmra.mxu0 %v2551
      %v2553 = vpop.f32.mrf.mxu0
      %v2554 = vadd.f32 %v2408, %v2553
      %v2555 = vand.u32 %v347, 4294901760
      %2556 = vmatmul.f32.gmra.mxu0 %v2555
      %v2557 = vpop.f32.mrf.mxu0
      %v2558 = vadd.f32 %v2412, %v2557
      %v2559 = vand.u32 %v350, 4294901760
      %2560 = vmatmul.f32.gmra.mxu0 %v2559
      %v2561 = vpop.f32.mrf.mxu0
      %v2562 = vadd.f32 %v2416, %v2561
      %v2563 = vand.u32 %v353, 4294901760
      %2564 = vmatmul.f32.gmra.mxu0 %v2563
      %v2565 = vpop.f32.mrf.mxu0
      %v2566 = vadd.f32 %v2420, %v2565
      %v2567 = vand.u32 %v356, 4294901760
      %2568 = vmatmul.f32.gmra.mxu0 %v2567
      %v2569 = vpop.f32.mrf.mxu0
      %v2570 = vadd.f32 %v2424, %v2569
      %v2571 = vand.u32 %v359, 4294901760
      %2572 = vmatmul.f32.gmra.mxu0 %v2571
      %v2573 = vpop.f32.mrf.mxu0
      %v2574 = vadd.f32 %v2428, %v2573
      %v2575 = vand.u32 %v362, 4294901760
      %2576 = vmatmul.f32.gmra.mxu0 %v2575
      %v2577 = vpop.f32.mrf.mxu0
      %v2578 = vadd.f32 %v2432, %v2577
      %v2579 = vand.u32 %v365, 4294901760
      %2580 = vmatmul.f32.gmra.mxu0 %v2579
      %v2581 = vpop.f32.mrf.mxu0
      %v2582 = vadd.f32 %v2436, %v2581
      %v2583 = vand.u32 %v368, 4294901760
      %2584 = vmatmul.f32.gmra.mxu0 %v2583
      %v2585 = vpop.f32.mrf.mxu0
      %v2586 = vadd.f32 %v2440, %v2585
      %v2587 = vand.u32 %v371, 4294901760
      %2588 = vmatmul.f32.gmra.mxu0 %v2587
      %v2589 = vpop.f32.mrf.mxu0
      %v2590 = vadd.f32 %v2444, %v2589
      %2591 = vdwg.mxu0
      %2592 = vst [vmem:[%s236] sm:$0xff] %v1359
      %2593 = vst [vmem:[%s236 + $0x8] sm:$0xff] %v2466
      %2594 = vst [vmem:[%s236 + $0x10] sm:$0xff] %v1363
      %2595 = vst [vmem:[%s236 + $0x18] sm:$0xff] %v2470
      %2596 = vst [vmem:[%s236 + $0x20] sm:$0xff] %v1367
      %2597 = vst [vmem:[%s236 + $0x28] sm:$0xff] %v2474
      %2598 = vst [vmem:[%s236 + $0x30] sm:$0xff] %v1371
      %2599 = vst [vmem:[%s236 + $0x38] sm:$0xff] %v2478
      %2600 = vst [vmem:[%s236 + $0x40] sm:$0xff] %v1375
      %2601 = vst [vmem:[%s236 + $0x48] sm:$0xff] %v2482
      %2602 = vst [vmem:[%s236 + $0x50] sm:$0xff] %v1379
      %2603 = vst [vmem:[%s236 + $0x58] sm:$0xff] %v2486
      %2604 = vst [vmem:[%s236 + $0x60] sm:$0xff] %v1383
      %2605 = vst [vmem:[%s236 + $0x68] sm:$0xff] %v2490
      %2606 = vst [vmem:[%s236 + $0x70] sm:$0xff] %v1387
      %2607 = vst [vmem:[%s236 + $0x78] sm:$0xff] %v2494
      %2608 = vst [vmem:[%s236 + $0x80] sm:$0xff] %v1391
      %2609 = vst [vmem:[%s236 + $0x88] sm:$0xff] %v2498
      %2610 = vst [vmem:[%s236 + $0x90] sm:$0xff] %v1395
      %2611 = vst [vmem:[%s236 + $0x98] sm:$0xff] %v2502
      %2612 = vst [vmem:[%s236 + $0xa0] sm:$0xff] %v1399
      %2613 = vst [vmem:[%s236 + $0xa8] sm:$0xff] %v2506
      %2614 = vst [vmem:[%s236 + $0xb0] sm:$0xff] %v1403
      %2615 = vst [vmem:[%s236 + $0xb8] sm:$0xff] %v2510
      %2616 = vst [vmem:[%s236 + $0xc0] sm:$0xff] %v1407
      %2617 = vst [vmem:[%s236 + $0xc8] sm:$0xff] %v2514
      %2618 = vst [vmem:[%s236 + $0xd0] sm:$0xff] %v1411
      %2619 = vst [vmem:[%s236 + $0xd8] sm:$0xff] %v2518
      %2620 = vst [vmem:[%s236 + $0xe0] sm:$0xff] %v1415
      %2621 = vst [vmem:[%s236 + $0xe8] sm:$0xff] %v2522
      %2622 = vst [vmem:[%s236 + $0xf0] sm:$0xff] %v1419
      %2623 = vst [vmem:[%s236 + $0xf8] sm:$0xff] %v2526
      %2624 = vst [vmem:[%s236 + $0x100] sm:$0xff] %v1423
      %2625 = vst [vmem:[%s236 + $0x108] sm:$0xff] %v2530
      %2626 = vst [vmem:[%s236 + $0x110] sm:$0xff] %v1427
      %2627 = vst [vmem:[%s236 + $0x118] sm:$0xff] %v2534
      %2628 = vst [vmem:[%s236 + $0x120] sm:$0xff] %v1431
      %2629 = vst [vmem:[%s236 + $0x128] sm:$0xff] %v2538
      %2630 = vst [vmem:[%s236 + $0x130] sm:$0xff] %v1435
      %2631 = vst [vmem:[%s236 + $0x138] sm:$0xff] %v2542
      %2632 = vst [vmem:[%s236 + $0x140] sm:$0xff] %v1439
      %2633 = vst [vmem:[%s236 + $0x148] sm:$0xff] %v2546
      %2634 = vst [vmem:[%s236 + $0x150] sm:$0xff] %v1443
      %2635 = vst [vmem:[%s236 + $0x158] sm:$0xff] %v2550
      %2636 = vst [vmem:[%s236 + $0x160] sm:$0xff] %v1447
      %2637 = vst [vmem:[%s236 + $0x168] sm:$0xff] %v2554
      %2638 = vst [vmem:[%s236 + $0x170] sm:$0xff] %v1451
      %2639 = vst [vmem:[%s236 + $0x178] sm:$0xff] %v2558
      %2640 = vst [vmem:[%s236 + $0x180] sm:$0xff] %v1455
      %2641 = vst [vmem:[%s236 + $0x188] sm:$0xff] %v2562
      %2642 = vst [vmem:[%s236 + $0x190] sm:$0xff] %v1459
      %2643 = vst [vmem:[%s236 + $0x198] sm:$0xff] %v2566
      %2644 = vst [vmem:[%s236 + $0x1a0] sm:$0xff] %v1463
      %2645 = vst [vmem:[%s236 + $0x1a8] sm:$0xff] %v2570
      %2646 = vst [vmem:[%s236 + $0x1b0] sm:$0xff] %v1467
      %2647 = vst [vmem:[%s236 + $0x1b8] sm:$0xff] %v2574
      %2648 = vst [vmem:[%s236 + $0x1c0] sm:$0xff] %v1471
      %2649 = vst [vmem:[%s236 + $0x1c8] sm:$0xff] %v2578
      %2650 = vst [vmem:[%s236 + $0x1d0] sm:$0xff] %v1475
      %2651 = vst [vmem:[%s236 + $0x1d8] sm:$0xff] %v2582
      %2652 = vst [vmem:[%s236 + $0x1e0] sm:$0xff] %v1479
      %2653 = vst [vmem:[%s236 + $0x1e8] sm:$0xff] %v2586
      %2654 = vst [vmem:[%s236 + $0x1f0] sm:$0xff] %v1483
      %2655 = vst [vmem:[%s236 + $0x1f8] sm:$0xff] %v2590
      %s2656 = smul.u32 32, %s19
      %s2657 = smul.u32 2, %s20
      %p2658 = scmp.lt.s32.totalorder %s18, 1
      %s2659 = scalar_select %p2658, %s18, 1
      %p2660 = scmp.lt.s32.totalorder %s2656, 31
      %s2661 = scalar_select %p2660, %s2656, 31
      %p2662 = scmp.lt.s32.totalorder %s2657, 1
      %s2663 = scalar_select %p2662, %s2657, 1
      %s2664 = smul.addr %s2661, 2
      %s2665 = sadd.s32 %s2663, %s2664
      %s2666 = smul.addr %s2659, 64
      %s2667 = sadd.s32 %s2665, %s2666
      %s2668 = smul.addr %s2667, 8
      %s2669 = scalar_lea.vmem %s2, %s2668
      // Predicated region
      $region29: #{feature_correlation.1} parent=27 // pred_check
        %p2670 = pneg %p110
      $region30: #{feature_correlation.1} parent=27 // pred_check_branch
        %2672 = sbr.rel (%p2670) target = $region32
      $region31: #{feature_correlation.1} parent=27 // pred_region
        %s2673 = smul.u32 32, %s19
        %s2674 = smul.u32 2, %s20
      $region32: #{feature_correlation.1} parent=27 // pred_fallthru
        _
    $region28: #{feature_correlation.1} parent=5 // pred_fallthru
      _
    %p2675 = scmp.le.s32.totalorder 2, %s8
    // Predicated region
    $region33: #{feature_correlation.1} parent=5 // pred_check
      %p2676 = pneg %p2675
    $region34: #{feature_correlation.1} parent=5 // pred_check_branch
      %2678 = sbr.rel (%p2676) target = $region36
    $region35: #{feature_correlation.1} parent=5 // pred_region
      %s2679 = ssub.s32 %s8, 2
      // Predicated region
      $region37: #{feature_correlation.1} parent=35 // pred_check
        %p2680 = pneg %p116
      $region38: #{feature_correlation.1} parent=35 // pred_check_branch
        %2682 = sbr.rel (%p2680) target = $region40
      $region39: #{feature_correlation.1} parent=35 // pred_region
        %s2683 = smul.u32 32, %s22
        %s2684 = smul.u32 2, %s23
        %p2685 = scmp.lt.s32.totalorder %s21, 1
        %s2686 = scalar_select %p2685, %s21, 1
        %p2687 = scmp.lt.s32.totalorder %s2683, 31
        %s2688 = scalar_select %p2687, %s2683, 31
        %p2689 = scmp.lt.s32.totalorder %s2684, 1
        %s2690 = scalar_select %p2689, %s2684, 1
        %s2691 = smul.addr %s2688, 2
        %s2692 = sadd.s32 %s2690, %s2691
        %s2693 = smul.addr %s2686, 64
        %s2694 = sadd.s32 %s2692, %s2693
        %s2695 = smul.addr %s2694, 8
        %s2696 = scalar_lea.vmem %s2, %s2695
      $region40: #{feature_correlation.1} parent=35 // pred_fallthru
        _
    $region36: #{feature_correlation.1} parent=5 // pred_fallthru
      _
  $region6: #{feature_correlation.1} parent=0 // loop_footer
    %s12 = sadd.s32 1, %s8
  $region7: #{feature_correlation.1} parent=0 // loop_footer_branch
    %7 = sbr.rel target = $region3
  $region8: #{feature_correlation.1} parent=0 // loop_exit
    _

</llo_original>
